<compile_context>
chip_gen: v7x
topology: tpu7x:2x2x1
jax: 0.10.0
libtpu: 0.0.40
codegen_flags: <defaults>
</compile_context>

<pallas_src>
import math

import jax
import jax.numpy as jnp
from jax.experimental import pallas as pl
from jax.experimental.pallas import tpu as pltpu


def _round_up(x, m):
    return ((x + m - 1) // m) * m


def _padded_bytes(shape, dtype):
    """VMEM footprint of one buffer of `shape` after (8, 128) tile padding."""
    shape = tuple(shape)
    if len(shape) == 1:
        shape = (1,) + shape
    lead = 1
    for s in shape[:-2]:
        lead *= int(s)
    rows = _round_up(int(shape[-2]), 8)
    cols = _round_up(int(shape[-1]), 128)
    return lead * rows * cols * jnp.dtype(dtype).itemsize


def _vmem_capacity_bytes():
    """Physical per-core VMEM; conservative 64 MiB (v7x) fallback."""
    try:
        info = pltpu.get_tpu_info()
        cap = getattr(info, "vmem_capacity_bytes", None)
        if cap:
            return int(cap)
    except Exception:
        pass
    return 64 * 1024 * 1024


def embedding_kernel(x_ref, w1_ref, b1_ref, w2_ref, b2_ref, w3_ref, b3_ref,
                     alpha_ref, o_ref):
    """Fused MLP: (x @ W1 + b1) -PReLU-> (@ W2 + b2) -PReLU-> (@ W3 + b3)."""
    x = x_ref[...]                                   # [TILE_B, D] in incoming dtype
    if x.dtype != jnp.float32:
        x = x.astype(jnp.float32)                    # upcast after DMA (VPU, free here)

    h1 = jnp.dot(x, w1_ref[...], preferred_element_type=jnp.float32) + b1_ref[...]
    h1 = jnp.where(h1 > 0, h1, alpha_ref[0] * h1)    # PReLU, scalar alpha from SMEM

    h2 = jnp.dot(h1, w2_ref[...], preferred_element_type=jnp.float32) + b2_ref[...]
    h2 = jnp.where(h2 > 0, h2, alpha_ref[1] * h2)

    out = jnp.dot(h2, w3_ref[...], preferred_element_type=jnp.float32) + b3_ref[...]
    o_ref[...] = out.astype(o_ref.dtype)


# Feature-detection cache for pipeline_mode=pl.Buffered(1) on resident operands.
_SINGLE_BUFFER_WEIGHTS = None  # None = unknown; True/False after first call.


def embedding_net_forward(x, params):
    """Pallas-backed forward of the embedding net. x: [B, C, H, W] (any float/int dtype)."""
    global _SINGLE_BUFFER_WEIGHTS

    w1, b1, w2, b2, w3, b3, a1, a2 = params
    B = x.shape[0]
    # Row-major flatten only (no dtype cast in the wrapper). Under jax.jit this
    # reshape is a free bitcast; the kernel streams x in its native dtype.
    x_flat = x.reshape(B, -1)
    D = x_flat.shape[1]
    H1 = w1.shape[1]
    OUT = w3.shape[1]

    x_itemsize = jnp.dtype(x_flat.dtype).itemsize
    sublane = max(8, 32 // x_itemsize)               # 8 (f32) / 16 (bf16) / 32 (int8)
    lane = 128

    # --- VMEM-derived batch tile ---------------------------------------------
    vmem_cap = _vmem_capacity_bytes()
    budget = int(0.70 * vmem_cap)                    # headroom for compiler scratch / sems
    # Resident params: charge 2 buffers (worst case if Buffered(1) is unavailable).
    params_vmem = 2 * sum(_padded_bytes(p.shape, p.dtype)
                          for p in (w1, b1, w2, b2, w3, b3))
    # Per batch-row cost: double-buffered x block + lane-padded (OUT->128),
    # double-buffered f32 output block.
    per_row = 2 * D * x_itemsize + 2 * lane * 4
    avail = max(0, budget - params_vmem)
    max_rows = max(sublane, (avail // per_row) // sublane * sublane)

    tile_b = min(max_rows, _round_up(B, sublane))
    if B > sublane:
        # Keep >= 2 grid steps so the "parallel" axis can shard across both
        # v7x TensorCores (negligible cost on single-TC v5e/v6e).
        tile_b = min(tile_b, max(sublane, _round_up((B + 1) // 2, sublane)))
    tile_b = max(sublane, (tile_b // sublane) * sublane)

    grid = (pl.cdiv(B, tile_b),)                     # partial last tile handled by Pallas

    # Scoped-VMEM limit: clamp to physical VMEM minus headroom (v7x-safe).
    vmem_needed = params_vmem + tile_b * per_row
    vmem_limit = int(min(0.90 * vmem_cap, max(32 * 2**20, 1.25 * vmem_needed)))

    # Fold both PReLU alphas into one tiny SMEM operand.
    alphas = jnp.concatenate([a1.reshape(-1), a2.reshape(-1)]).astype(jnp.float32)

    def run(single_buffer_weights):
        # Resident operands: constant index_map; request single buffering when supported.
        wmode = ({"pipeline_mode": pl.Buffered(1)} if single_buffer_weights else {})
        in_specs = [
            pl.BlockSpec((tile_b, D), lambda i: (i, 0)),            # x: streamed, 2-buffered
            pl.BlockSpec((D, H1), lambda i: (0, 0), **wmode),       # W1
            pl.BlockSpec((1, H1), lambda i: (0, 0), **wmode),       # b1
            pl.BlockSpec((H1, H1), lambda i: (0, 0), **wmode),      # W2
            pl.BlockSpec((1, H1), lambda i: (0, 0), **wmode),       # b2
            pl.BlockSpec((H1, OUT), lambda i: (0, 0), **wmode),     # W3
            pl.BlockSpec((1, OUT), lambda i: (0, 0), **wmode),      # b3
            pl.BlockSpec(memory_space=pltpu.MemorySpace.SMEM),      # PReLU alphas
        ]
        call = pl.pallas_call(
            embedding_kernel,
            out_shape=jax.ShapeDtypeStruct((B, OUT), jnp.float32),
            grid=grid,
            in_specs=in_specs,
            # Lane-sparse (tile_b, 2) output accepted knowingly: output bytes are
            # tiny; its padded VMEM cost is already charged in `per_row`.
            out_specs=pl.BlockSpec((tile_b, OUT), lambda i: (i, 0)),
            compiler_params=pltpu.CompilerParams(
                dimension_semantics=("parallel",),
                vmem_limit_bytes=vmem_limit,
            ),
        )
        return call(x_flat, w1, b1, w2, b2, w3, b3, alphas)

    if _SINGLE_BUFFER_WEIGHTS is None:
        try:
            out = run(True)
            _SINGLE_BUFFER_WEIGHTS = True
        except Exception:
            # pipeline_mode=Buffered(1) not supported by this jax/libtpu build:
            # fall back to default double-buffered resident params (already
            # accounted for in the VMEM budget).
            _SINGLE_BUFFER_WEIGHTS = False
            out = run(False)
    else:
        out = run(_SINGLE_BUFFER_WEIGHTS)
    return out


class OnlineTripletNet:
    """JAX/Pallas port of the PyTorch OnlineTripletNet wrapper."""

    def __init__(self, embedding_params):
        self.embedding_params = embedding_params

    def forward(self, x):
        return embedding_net_forward(x, self.embedding_params)

    def get_embedding(self, x):
        return embedding_net_forward(x, self.embedding_params)


def init_embedding_params(key, in_dim, hidden=32, out_dim=2):
    """Deterministic init mimicking PyTorch nn.Linear default (U[-1/sqrt(fan_in), ...])."""
    ks = jax.random.split(key, 6)

    def linear(kw, kb, fan_in, fan_out):
        bound = 1.0 / math.sqrt(fan_in)
        w = jax.random.uniform(kw, (fan_in, fan_out), jnp.float32, -bound, bound)
        b = jax.random.uniform(kb, (1, fan_out), jnp.float32, -bound, bound)
        return w, b

    w1, b1 = linear(ks[0], ks[1], in_dim, hidden)
    w2, b2 = linear(ks[2], ks[3], hidden, hidden)
    w3, b3 = linear(ks[4], ks[5], hidden, out_dim)
    a1 = jnp.full((1, 1), 0.25, jnp.float32)         # nn.PReLU() default init
    a2 = jnp.full((1, 1), 0.25, jnp.float32)
    return (w1, b1, w2, b2, w3, b3, a1, a2)


def reference_forward(x, params):
    """Pure-JAX reference for correctness checking."""
    w1, b1, w2, b2, w3, b3, a1, a2 = params
    h = x.reshape(x.shape[0], -1).astype(jnp.float32)
    h = h @ w1 + b1
    h = jnp.where(h > 0, h, a1[0, 0] * h)
    h = h @ w2 + b2
    h = jnp.where(h > 0, h, a2[0, 0] * h)
    return h @ w3 + b3


if __name__ == "__main__":
    key = jax.random.PRNGKey(0)
    k_x, k_p = jax.random.split(key)

    B, C, H, W = 2, 4, 16, 16                        # small NCHW input
    x = jax.random.normal(k_x, (B, C, H, W), jnp.float32)

    params = init_embedding_params(k_p, in_dim=C * H * W, hidden=32, out_dim=2)
    net = OnlineTripletNet(params)

    ref = jax.block_until_ready(reference_forward(x, params))

    # f32 input path (also exercises the partial-tile path: B=2 < tile_b).
    out = jax.block_until_ready(net.forward(x))
    assert out.shape == (B, 2), out.shape
    assert bool(jnp.all(jnp.isfinite(out))), "non-finite output"
    assert jnp.allclose(out, ref, rtol=1e-4, atol=1e-4), "f32 mismatch vs JAX reference"

    # bf16 upstream input: kernel streams bf16 from HBM and upcasts in-kernel
    # (half the bytes on the dominant x stream, no wrapper-side recast).
    x_bf16 = x.astype(jnp.bfloat16)
    ref_bf16 = jax.block_until_ready(reference_forward(x_bf16, params))
    out_bf16 = jax.block_until_ready(net.get_embedding(x_bf16))
    assert out_bf16.shape == (B, 2), out_bf16.shape
    assert jnp.allclose(out_bf16, ref_bf16, rtol=1e-3, atol=1e-3), "bf16 mismatch vs JAX reference"

    print("KERNEL_OK")
</pallas_src>

<mosaic_0001>
module attributes {stable_mosaic.version = 11 : i64} {
  func.func @embedding_kernel(%arg0: i32, %arg1: memref<8x1024xf32, #tpu.memory_space<vmem>>, %arg2: memref<1024x32xf32, #tpu.memory_space<vmem>>, %arg3: memref<1x32xf32, #tpu.memory_space<vmem>>, %arg4: memref<32x32xf32, #tpu.memory_space<vmem>>, %arg5: memref<1x32xf32, #tpu.memory_space<vmem>>, %arg6: memref<32x2xf32, #tpu.memory_space<vmem>>, %arg7: memref<1x2xf32, #tpu.memory_space<vmem>>, %arg8: memref<2xf32, #tpu.memory_space<smem>>, %arg9: memref<8x2xf32, #tpu.memory_space<vmem>>) attributes {dimension_semantics = [#tpu.dimension_semantics<parallel>], iteration_bounds = array<i64: 1>, scalar_prefetch = 0 : i64, scratch_operands = 0 : i64, tpu.core_type = #tpu.core_type<tc>, window_params = [{transform_indices = @transform_0, window_bounds = array<i64: 8, 1024>}, {pipeline_mode = #tpu.pipeline_mode<synchronous>, transform_indices = @transform_1, window_bounds = array<i64: 1024, 32>}, {pipeline_mode = #tpu.pipeline_mode<synchronous>, transform_indices = @transform_2, window_bounds = array<i64: 1, 32>}, {pipeline_mode = #tpu.pipeline_mode<synchronous>, transform_indices = @transform_3, window_bounds = array<i64: 32, 32>}, {pipeline_mode = #tpu.pipeline_mode<synchronous>, transform_indices = @transform_4, window_bounds = array<i64: 1, 32>}, {pipeline_mode = #tpu.pipeline_mode<synchronous>, transform_indices = @transform_5, window_bounds = array<i64: 32, 2>}, {pipeline_mode = #tpu.pipeline_mode<synchronous>, transform_indices = @transform_6, window_bounds = array<i64: 1, 2>}, {transform_indices = @transform_7, window_bounds = array<i64: 2>}, {transform_indices = @transform_8, window_bounds = array<i64: 8, 2>}]} {
    %c0 = arith.constant 0 : index
    %c0_0 = arith.constant 0 : index
    %0 = vector.load %arg1[%c0, %c0_0] : memref<8x1024xf32, #tpu.memory_space<vmem>>, vector<8x1024xf32>
    %c0_1 = arith.constant 0 : index
    %c0_2 = arith.constant 0 : index
    %1 = vector.load %arg2[%c0_1, %c0_2] : memref<1024x32xf32, #tpu.memory_space<vmem>>, vector<1024x32xf32>
    %cst = arith.constant dense<0.000000e+00> : vector<8x32xf32>
    %2 = tpu.matmul %0, %1, %cst {dimension_numbers = #tpu.dot_dimension_numbers<[1], [0], [0], [1], [0, 0, 1, 1], [], []>} : vector<8x1024xf32>, vector<1024x32xf32>, vector<8x32xf32> -> vector<8x32xf32>
    %c0_3 = arith.constant 0 : index
    %c0_4 = arith.constant 0 : index
    %3 = vector.load %arg3[%c0_3, %c0_4] : memref<1x32xf32, #tpu.memory_space<vmem>>, vector<1x32xf32>
    %4 = vector.broadcast %3 : vector<1x32xf32> to vector<8x32xf32>
    %5 = arith.addf %2, %4 : vector<8x32xf32>
    %cst_5 = arith.constant 0.000000e+00 : f32
    %6 = vector.broadcast %cst_5 : f32 to vector<8x32xf32>
    %7 = arith.cmpf ogt, %5, %6 : vector<8x32xf32>
    %c0_6 = arith.constant 0 : index
    %8 = memref.load %arg8[%c0_6] : memref<2xf32, #tpu.memory_space<smem>>
    %9 = vector.broadcast %8 : f32 to vector<8x32xf32>
    %10 = arith.mulf %9, %5 : vector<8x32xf32>
    %11 = arith.select %7, %5, %10 : vector<8x32xi1>, vector<8x32xf32>
    %c0_7 = arith.constant 0 : index
    %c0_8 = arith.constant 0 : index
    %12 = vector.load %arg4[%c0_7, %c0_8] : memref<32x32xf32, #tpu.memory_space<vmem>>, vector<32x32xf32>
    %cst_9 = arith.constant dense<0.000000e+00> : vector<8x32xf32>
    %13 = tpu.matmul %11, %12, %cst_9 {dimension_numbers = #tpu.dot_dimension_numbers<[1], [0], [0], [1], [0, 0, 1, 1], [], []>} : vector<8x32xf32>, vector<32x32xf32>, vector<8x32xf32> -> vector<8x32xf32>
    %c0_10 = arith.constant 0 : index
    %c0_11 = arith.constant 0 : index
    %14 = vector.load %arg5[%c0_10, %c0_11] : memref<1x32xf32, #tpu.memory_space<vmem>>, vector<1x32xf32>
    %15 = vector.broadcast %14 : vector<1x32xf32> to vector<8x32xf32>
    %16 = arith.addf %13, %15 : vector<8x32xf32>
    %cst_12 = arith.constant 0.000000e+00 : f32
    %17 = vector.broadcast %cst_12 : f32 to vector<8x32xf32>
    %18 = arith.cmpf ogt, %16, %17 : vector<8x32xf32>
    %c1 = arith.constant 1 : index
    %19 = memref.load %arg8[%c1] : memref<2xf32, #tpu.memory_space<smem>>
    %20 = vector.broadcast %19 : f32 to vector<8x32xf32>
    %21 = arith.mulf %20, %16 : vector<8x32xf32>
    %22 = arith.select %18, %16, %21 : vector<8x32xi1>, vector<8x32xf32>
    %c0_13 = arith.constant 0 : index
    %c0_14 = arith.constant 0 : index
    %23 = vector.load %arg6[%c0_13, %c0_14] : memref<32x2xf32, #tpu.memory_space<vmem>>, vector<32x2xf32>
    %cst_15 = arith.constant dense<0.000000e+00> : vector<8x2xf32>
    %24 = tpu.matmul %22, %23, %cst_15 {dimension_numbers = #tpu.dot_dimension_numbers<[1], [0], [0], [1], [0, 0, 1, 1], [], []>} : vector<8x32xf32>, vector<32x2xf32>, vector<8x2xf32> -> vector<8x2xf32>
    %c0_16 = arith.constant 0 : index
    %c0_17 = arith.constant 0 : index
    %25 = vector.load %arg7[%c0_16, %c0_17] : memref<1x2xf32, #tpu.memory_space<vmem>>, vector<1x2xf32>
    %26 = vector.broadcast %25 : vector<1x2xf32> to vector<8x2xf32>
    %27 = arith.addf %24, %26 : vector<8x2xf32>
    %c0_18 = arith.constant 0 : index
    %c0_19 = arith.constant 0 : index
    %28 = vector.load %arg9[%c0_18, %c0_19] : memref<8x2xf32, #tpu.memory_space<vmem>>, vector<8x2xf32>
    tpu.vector_store %arg9[%c0_18, %c0_19], %27 {strides = array<i32>} : memref<8x2xf32, #tpu.memory_space<vmem>>, vector<8x2xf32>,
    return
  }
  func.func @transform_0(%arg0: i32) -> (i32, i32) {
    %c0_i32 = arith.constant 0 : i32
    %c0_i32_0 = arith.constant 0 : i32
    return %arg0, %c0_i32 : i32, i32
  }
  func.func @transform_1(%arg0: i32) -> (i32, i32) {
    %c0_i32 = arith.constant 0 : i32
    %c0_i32_0 = arith.constant 0 : i32
    %c0_i32_1 = arith.constant 0 : i32
    return %c0_i32, %c0_i32_0 : i32, i32
  }
  func.func @transform_2(%arg0: i32) -> (i32, i32) {
    %c0_i32 = arith.constant 0 : i32
    %c0_i32_0 = arith.constant 0 : i32
    %c0_i32_1 = arith.constant 0 : i32
    return %c0_i32, %c0_i32_0 : i32, i32
  }
  func.func @transform_3(%arg0: i32) -> (i32, i32) {
    %c0_i32 = arith.constant 0 : i32
    %c0_i32_0 = arith.constant 0 : i32
    %c0_i32_1 = arith.constant 0 : i32
    return %c0_i32, %c0_i32_0 : i32, i32
  }
  func.func @transform_4(%arg0: i32) -> (i32, i32) {
    %c0_i32 = arith.constant 0 : i32
    %c0_i32_0 = arith.constant 0 : i32
    %c0_i32_1 = arith.constant 0 : i32
    return %c0_i32, %c0_i32_0 : i32, i32
  }
  func.func @transform_5(%arg0: i32) -> (i32, i32) {
    %c0_i32 = arith.constant 0 : i32
    %c0_i32_0 = arith.constant 0 : i32
    %c0_i32_1 = arith.constant 0 : i32
    return %c0_i32, %c0_i32_0 : i32, i32
  }
  func.func @transform_6(%arg0: i32) -> (i32, i32) {
    %c0_i32 = arith.constant 0 : i32
    %c0_i32_0 = arith.constant 0 : i32
    %c0_i32_1 = arith.constant 0 : i32
    return %c0_i32, %c0_i32_0 : i32, i32
  }
  func.func @transform_7(%arg0: i32) -> i32 {
    %c0_i32 = arith.constant 0 : i32
    %c0_i32_0 = arith.constant 0 : i32
    return %c0_i32 : i32
  }
  func.func @transform_8(%arg0: i32) -> (i32, i32) {
    %c0_i32 = arith.constant 0 : i32
    %c0_i32_0 = arith.constant 0 : i32
    return %arg0, %c0_i32 : i32, i32
  }
}

module attributes {stable_mosaic.version = 11 : i64} {
  func.func @embedding_kernel(%arg0: i32, %arg1: memref<8x1024xf32, #tpu.memory_space<vmem>>, %arg2: memref<1024x32xf32, #tpu.memory_space<vmem>>, %arg3: memref<1x32xf32, #tpu.memory_space<vmem>>, %arg4: memref<32x32xf32, #tpu.memory_space<vmem>>, %arg5: memref<1x32xf32, #tpu.memory_space<vmem>>, %arg6: memref<32x2xf32, #tpu.memory_space<vmem>>, %arg7: memref<1x2xf32, #tpu.memory_space<vmem>>, %arg8: memref<2xf32, #tpu.memory_space<smem>>, %arg9: memref<8x2xf32, #tpu.memory_space<vmem>>) attributes {dimension_semantics = [#tpu.dimension_semantics<parallel>], iteration_bounds = array<i64: 1>, scalar_prefetch = 0 : i64, scratch_operands = 0 : i64, tpu.core_type = #tpu.core_type<tc>, window_params = [{transform_indices = @transform_0, window_bounds = array<i64: 8, 1024>}, {pipeline_mode = #tpu.pipeline_mode<synchronous>, transform_indices = @transform_1, window_bounds = array<i64: 1024, 32>}, {pipeline_mode = #tpu.pipeline_mode<synchronous>, transform_indices = @transform_2, window_bounds = array<i64: 1, 32>}, {pipeline_mode = #tpu.pipeline_mode<synchronous>, transform_indices = @transform_3, window_bounds = array<i64: 32, 32>}, {pipeline_mode = #tpu.pipeline_mode<synchronous>, transform_indices = @transform_4, window_bounds = array<i64: 1, 32>}, {pipeline_mode = #tpu.pipeline_mode<synchronous>, transform_indices = @transform_5, window_bounds = array<i64: 32, 2>}, {pipeline_mode = #tpu.pipeline_mode<synchronous>, transform_indices = @transform_6, window_bounds = array<i64: 1, 2>}, {transform_indices = @transform_7, window_bounds = array<i64: 2>}, {transform_indices = @transform_8, window_bounds = array<i64: 8, 2>}]} {
    %c0 = arith.constant 0 : index
    %c0_0 = arith.constant 0 : index
    %0 = vector.load %arg1[%c0, %c0_0] : memref<8x1024xf32, #tpu.memory_space<vmem>>, vector<8x1024xf32>
    %c0_1 = arith.constant 0 : index
    %c0_2 = arith.constant 0 : index
    %1 = vector.load %arg2[%c0_1, %c0_2] : memref<1024x32xf32, #tpu.memory_space<vmem>>, vector<1024x32xf32>
    %cst = arith.constant dense<0.000000e+00> : vector<8x32xf32>
    %2 = tpu.matmul %0, %1, %cst {dimension_numbers = #tpu.dot_dimension_numbers<[1], [0], [0], [1], [0, 0, 1, 1], [], []>} : vector<8x1024xf32>, vector<1024x32xf32>, vector<8x32xf32> -> vector<8x32xf32>
    %c0_3 = arith.constant 0 : index
    %c0_4 = arith.constant 0 : index
    %3 = vector.load %arg3[%c0_3, %c0_4] : memref<1x32xf32, #tpu.memory_space<vmem>>, vector<1x32xf32>
    %4 = vector.broadcast %3 : vector<1x32xf32> to vector<8x32xf32>
    %5 = arith.addf %2, %4 : vector<8x32xf32>
    %cst_5 = arith.constant 0.000000e+00 : f32
    %6 = vector.broadcast %cst_5 : f32 to vector<8x32xf32>
    %7 = arith.cmpf ogt, %5, %6 : vector<8x32xf32>
    %c0_6 = arith.constant 0 : index
    %8 = memref.load %arg8[%c0_6] : memref<2xf32, #tpu.memory_space<smem>>
    %9 = vector.broadcast %8 : f32 to vector<8x32xf32>
    %10 = arith.mulf %9, %5 : vector<8x32xf32>
    %11 = arith.select %7, %5, %10 : vector<8x32xi1>, vector<8x32xf32>
    %c0_7 = arith.constant 0 : index
    %c0_8 = arith.constant 0 : index
    %12 = vector.load %arg4[%c0_7, %c0_8] : memref<32x32xf32, #tpu.memory_space<vmem>>, vector<32x32xf32>
    %cst_9 = arith.constant dense<0.000000e+00> : vector<8x32xf32>
    %13 = tpu.matmul %11, %12, %cst_9 {dimension_numbers = #tpu.dot_dimension_numbers<[1], [0], [0], [1], [0, 0, 1, 1], [], []>} : vector<8x32xf32>, vector<32x32xf32>, vector<8x32xf32> -> vector<8x32xf32>
    %c0_10 = arith.constant 0 : index
    %c0_11 = arith.constant 0 : index
    %14 = vector.load %arg5[%c0_10, %c0_11] : memref<1x32xf32, #tpu.memory_space<vmem>>, vector<1x32xf32>
    %15 = vector.broadcast %14 : vector<1x32xf32> to vector<8x32xf32>
    %16 = arith.addf %13, %15 : vector<8x32xf32>
    %cst_12 = arith.constant 0.000000e+00 : f32
    %17 = vector.broadcast %cst_12 : f32 to vector<8x32xf32>
    %18 = arith.cmpf ogt, %16, %17 : vector<8x32xf32>
    %c1 = arith.constant 1 : index
    %19 = memref.load %arg8[%c1] : memref<2xf32, #tpu.memory_space<smem>>
    %20 = vector.broadcast %19 : f32 to vector<8x32xf32>
    %21 = arith.mulf %20, %16 : vector<8x32xf32>
    %22 = arith.select %18, %16, %21 : vector<8x32xi1>, vector<8x32xf32>
    %c0_13 = arith.constant 0 : index
    %c0_14 = arith.constant 0 : index
    %23 = vector.load %arg6[%c0_13, %c0_14] : memref<32x2xf32, #tpu.memory_space<vmem>>, vector<32x2xf32>
    %cst_15 = arith.constant dense<0.000000e+00> : vector<8x2xf32>
    %24 = tpu.matmul %22, %23, %cst_15 {dimension_numbers = #tpu.dot_dimension_numbers<[1], [0], [0], [1], [0, 0, 1, 1], [], []>} : vector<8x32xf32>, vector<32x2xf32>, vector<8x2xf32> -> vector<8x2xf32>
    %c0_16 = arith.constant 0 : index
    %c0_17 = arith.constant 0 : index
    %25 = vector.load %arg7[%c0_16, %c0_17] : memref<1x2xf32, #tpu.memory_space<vmem>>, vector<1x2xf32>
    %26 = vector.broadcast %25 : vector<1x2xf32> to vector<8x2xf32>
    %27 = arith.addf %24, %26 : vector<8x2xf32>
    %c0_18 = arith.constant 0 : index
    %c0_19 = arith.constant 0 : index
    %28 = vector.load %arg9[%c0_18, %c0_19] : memref<8x2xf32, #tpu.memory_space<vmem>>, vector<8x2xf32>
    tpu.vector_store %arg9[%c0_18, %c0_19], %27 {strides = array<i32>} : memref<8x2xf32, #tpu.memory_space<vmem>>, vector<8x2xf32>,
    return
  }
  func.func @transform_0(%arg0: i32) -> (i32, i32) {
    %c0_i32 = arith.constant 0 : i32
    %c0_i32_0 = arith.constant 0 : i32
    return %arg0, %c0_i32 : i32, i32
  }
  func.func @transform_1(%arg0: i32) -> (i32, i32) {
    %c0_i32 = arith.constant 0 : i32
    %c0_i32_0 = arith.constant 0 : i32
    %c0_i32_1 = arith.constant 0 : i32
    return %c0_i32, %c0_i32_0 : i32, i32
  }
  func.func @transform_2(%arg0: i32) -> (i32, i32) {
    %c0_i32 = arith.constant 0 : i32
    %c0_i32_0 = arith.constant 0 : i32
    %c0_i32_1 = arith.constant 0 : i32
    return %c0_i32, %c0_i32_0 : i32, i32
  }
  func.func @transform_3(%arg0: i32) -> (i32, i32) {
    %c0_i32 = arith.constant 0 : i32
    %c0_i32_0 = arith.constant 0 : i32
    %c0_i32_1 = arith.constant 0 : i32
    return %c0_i32, %c0_i32_0 : i32, i32
  }
  func.func @transform_4(%arg0: i32) -> (i32, i32) {
    %c0_i32 = arith.constant 0 : i32
    %c0_i32_0 = arith.constant 0 : i32
    %c0_i32_1 = arith.constant 0 : i32
    return %c0_i32, %c0_i32_0 : i32, i32
  }
  func.func @transform_5(%arg0: i32) -> (i32, i32) {
    %c0_i32 = arith.constant 0 : i32
    %c0_i32_0 = arith.constant 0 : i32
    %c0_i32_1 = arith.constant 0 : i32
    return %c0_i32, %c0_i32_0 : i32, i32
  }
  func.func @transform_6(%arg0: i32) -> (i32, i32) {
    %c0_i32 = arith.constant 0 : i32
    %c0_i32_0 = arith.constant 0 : i32
    %c0_i32_1 = arith.constant 0 : i32
    return %c0_i32, %c0_i32_0 : i32, i32
  }
  func.func @transform_7(%arg0: i32) -> i32 {
    %c0_i32 = arith.constant 0 : i32
    %c0_i32_0 = arith.constant 0 : i32
    return %c0_i32 : i32
  }
  func.func @transform_8(%arg0: i32) -> (i32, i32) {
    %c0_i32 = arith.constant 0 : i32
    %c0_i32_0 = arith.constant 0 : i32
    return %arg0, %c0_i32 : i32, i32
  }
}

</mosaic_0001>

<llo_original>
// kernel: tpu_custom_call.1
$region0: #{tpu_custom_call.1}
  #allocation0 [shape = 'u32[]', space=smem, size = 0x4, offset = 0x4, fixed_abs, tag = 'smem constant byte address 0x4 - core index']
  #allocation1 [shape = 'u32[144,128]{1,0:T(1,128)}', space=vmem, size = 0x12000, scoped, tag = 'internal scratch']
  %s0 = inlined_call_operand.vmem [shape: f32[2,1024], index: 0, kind: input, shape index: {}]
  %s1 = inlined_call_operand.vmem [shape: f32[1024,32], index: 1, kind: input, shape index: {}]
  %s2 = inlined_call_operand.vmem [shape: f32[1,32], index: 2, kind: input, shape index: {}]
  %s3 = inlined_call_operand.vmem [shape: f32[32,32], index: 3, kind: input, shape index: {}]
  %s4 = inlined_call_operand.vmem [shape: f32[1,32], index: 4, kind: input, shape index: {}]
  %s5 = inlined_call_operand.vmem [shape: f32[32,2], index: 5, kind: input, shape index: {}]
  %s6 = inlined_call_operand.vmem [shape: f32[1,2], index: 6, kind: input, shape index: {}]
  %s7 = inlined_call_operand.vmem [shape: f32[2], index: 7, kind: input, shape index: {}]
  %s8 = inlined_call_operand.hbm [shape: f32[2,2], index: 8, kind: output, shape index: {}]
  %s9 = sld [smem:[#allocation0]]
  $region46: #{tpu_custom_call.1} parent=0
    _
  %s11 = ssub.s32 1, %s9
  %s12 = scalar_select 0, %s11, %s9
  $region1: #{tpu_custom_call.1} parent=0
    #allocation2 [shape = 'u8[512]{0}', space=smem, size = 0x200, scoped, tag = 'input window, operand 7, single buffered']
    #allocation3 [shape = 's32[1]{0}', space=sflag, size = 0x4, scoped, tag = 'scoped memory for tpu_custom_call.1']
    #allocation4 [shape = 's32[1]{0}', space=sflag, size = 0x4, scoped, tag = 'scoped memory for tpu_custom_call.1']
    #allocation5 [shape = 'u8[4096]{0}', space=vmem, size = 0x1000, scoped, tag = 'output window, operand 0, single buffered']
    %13 = vsyncpa [#allocation4], 0
    %14 = vsyncpa [#allocation3], 0
    // Predicated region
    $region2: #{tpu_custom_call.1} parent=1 // pred_check
      _
    $region3: #{tpu_custom_call.1} parent=1 // pred_check_branch
      %16 = sbr.rel (0) target = $region5
    $region4: #{tpu_custom_call.1} parent=1 // pred_region
      _
    $region5: #{tpu_custom_call.1} parent=1 // pred_fallthru
      _
    // Predicated region
    $region6: #{tpu_custom_call.1} parent=1 // pred_check
      _
    $region7: #{tpu_custom_call.1} parent=1 // pred_check_branch
      %18 = sbr.rel (0) target = $region9
    $region8: #{tpu_custom_call.1} parent=1 // pred_region
      _
    $region9: #{tpu_custom_call.1} parent=1 // pred_fallthru
      _
    // Predicated region
    $region10: #{tpu_custom_call.1} parent=1 // pred_check
      _
    $region11: #{tpu_custom_call.1} parent=1 // pred_check_branch
      %20 = sbr.rel (0) target = $region13
    $region12: #{tpu_custom_call.1} parent=1 // pred_region
      _
    $region13: #{tpu_custom_call.1} parent=1 // pred_fallthru
      _
    // Predicated region
    $region14: #{tpu_custom_call.1} parent=1 // pred_check
      _
    $region15: #{tpu_custom_call.1} parent=1 // pred_check_branch
      %22 = sbr.rel (0) target = $region17
    $region16: #{tpu_custom_call.1} parent=1 // pred_region
      _
    $region17: #{tpu_custom_call.1} parent=1 // pred_fallthru
      _
    // Predicated region
    $region18: #{tpu_custom_call.1} parent=1 // pred_check
      _
    $region19: #{tpu_custom_call.1} parent=1 // pred_check_branch
      %24 = sbr.rel (0) target = $region21
    $region20: #{tpu_custom_call.1} parent=1 // pred_region
      _
    $region21: #{tpu_custom_call.1} parent=1 // pred_fallthru
      _
    // Predicated region
    $region22: #{tpu_custom_call.1} parent=1 // pred_check
      _
    $region23: #{tpu_custom_call.1} parent=1 // pred_check_branch
      %26 = sbr.rel (0) target = $region25
    $region24: #{tpu_custom_call.1} parent=1 // pred_region
      _
    $region25: #{tpu_custom_call.1} parent=1 // pred_fallthru
      _
    // Predicated region
    $region26: #{tpu_custom_call.1} parent=1 // pred_check
      _
    $region27: #{tpu_custom_call.1} parent=1 // pred_check_branch
      %28 = sbr.rel (0) target = $region29
    $region28: #{tpu_custom_call.1} parent=1 // pred_region
      _
    $region29: #{tpu_custom_call.1} parent=1 // pred_fallthru
      _
    // Predicated region
    $region30: #{tpu_custom_call.1} parent=1 // pred_check
      _
    $region31: #{tpu_custom_call.1} parent=1 // pred_check_branch
      %30 = sbr.rel (0) target = $region33
    $region32: #{tpu_custom_call.1} parent=1 // pred_region
      %s32 = ssub.s32 16, 16
      %33 = vsyncadd [#allocation4], %s32
      %s35 = sshll.u32 %s7, 4
      %s36 = int_to_ptr.vmem [resolvable:$true] %s35
      %38 = dma.vmem_to_smem %s36, 16, [#allocation2], [#allocation4]
    $region33: #{tpu_custom_call.1} parent=1 // pred_fallthru
      _
    // Predicated region
    $region34: #{tpu_custom_call.1} parent=1 // pred_check
      _
    $region35: #{tpu_custom_call.1} parent=1 // pred_check_branch
      %40 = sbr.rel (0) target = $region37
    $region36: #{tpu_custom_call.1} parent=1 // pred_region
      %41 = dma.done [#allocation4], 16
    $region37: #{tpu_custom_call.1} parent=1 // pred_fallthru
      _
    %42 = sfence
    %v43 = vld [vmem:[%s0] sm:$0xff]
    %v44 = vld [vmem:[%s0 + $0x8] sm:$0xff]
    %v45 = vld [vmem:[%s0 + $0x10] sm:$0xff]
    %v46 = vld [vmem:[%s0 + $0x18] sm:$0xff]
    %v47 = vld [vmem:[%s0 + $0x20] sm:$0xff]
    %v48 = vld [vmem:[%s0 + $0x28] sm:$0xff]
    %v49 = vld [vmem:[%s0 + $0x30] sm:$0xff]
    %v50 = vld [vmem:[%s0 + $0x38] sm:$0xff]
    %v51 = vld [vmem:[%s1] sm:$0xff]
    %v52 = vld [vmem:[%s1 + $0x8] sm:$0xff]
    %v53 = vld [vmem:[%s1 + $0x10] sm:$0xff]
    %v54 = vld [vmem:[%s1 + $0x18] sm:$0xff]
    %v55 = vld [vmem:[%s1 + $0x20] sm:$0xff]
    %v56 = vld [vmem:[%s1 + $0x28] sm:$0xff]
    %v57 = vld [vmem:[%s1 + $0x30] sm:$0xff]
    %v58 = vld [vmem:[%s1 + $0x38] sm:$0xff]
    %v59 = vld [vmem:[%s1 + $0x40] sm:$0xff]
    %v60 = vld [vmem:[%s1 + $0x48] sm:$0xff]
    %v61 = vld [vmem:[%s1 + $0x50] sm:$0xff]
    %v62 = vld [vmem:[%s1 + $0x58] sm:$0xff]
    %v63 = vld [vmem:[%s1 + $0x60] sm:$0xff]
    %v64 = vld [vmem:[%s1 + $0x68] sm:$0xff]
    %v65 = vld [vmem:[%s1 + $0x70] sm:$0xff]
    %v66 = vld [vmem:[%s1 + $0x78] sm:$0xff]
    %v67 = vld [vmem:[%s1 + $0x80] sm:$0xff]
    %v68 = vld [vmem:[%s1 + $0x88] sm:$0xff]
    %v69 = vld [vmem:[%s1 + $0x90] sm:$0xff]
    %v70 = vld [vmem:[%s1 + $0x98] sm:$0xff]
    %v71 = vld [vmem:[%s1 + $0xa0] sm:$0xff]
    %v72 = vld [vmem:[%s1 + $0xa8] sm:$0xff]
    %v73 = vld [vmem:[%s1 + $0xb0] sm:$0xff]
    %v74 = vld [vmem:[%s1 + $0xb8] sm:$0xff]
    %v75 = vld [vmem:[%s1 + $0xc0] sm:$0xff]
    %v76 = vld [vmem:[%s1 + $0xc8] sm:$0xff]
    %v77 = vld [vmem:[%s1 + $0xd0] sm:$0xff]
    %v78 = vld [vmem:[%s1 + $0xd8] sm:$0xff]
    %v79 = vld [vmem:[%s1 + $0xe0] sm:$0xff]
    %v80 = vld [vmem:[%s1 + $0xe8] sm:$0xff]
    %v81 = vld [vmem:[%s1 + $0xf0] sm:$0xff]
    %v82 = vld [vmem:[%s1 + $0xf8] sm:$0xff]
    %v83 = vld [vmem:[%s1 + $0x100] sm:$0xff]
    %v84 = vld [vmem:[%s1 + $0x108] sm:$0xff]
    %v85 = vld [vmem:[%s1 + $0x110] sm:$0xff]
    %v86 = vld [vmem:[%s1 + $0x118] sm:$0xff]
    %v87 = vld [vmem:[%s1 + $0x120] sm:$0xff]
    %v88 = vld [vmem:[%s1 + $0x128] sm:$0xff]
    %v89 = vld [vmem:[%s1 + $0x130] sm:$0xff]
    %v90 = vld [vmem:[%s1 + $0x138] sm:$0xff]
    %v91 = vld [vmem:[%s1 + $0x140] sm:$0xff]
    %v92 = vld [vmem:[%s1 + $0x148] sm:$0xff]
    %v93 = vld [vmem:[%s1 + $0x150] sm:$0xff]
    %v94 = vld [vmem:[%s1 + $0x158] sm:$0xff]
    %v95 = vld [vmem:[%s1 + $0x160] sm:$0xff]
    %v96 = vld [vmem:[%s1 + $0x168] sm:$0xff]
    %v97 = vld [vmem:[%s1 + $0x170] sm:$0xff]
    %v98 = vld [vmem:[%s1 + $0x178] sm:$0xff]
    %v99 = vld [vmem:[%s1 + $0x180] sm:$0xff]
    %v100 = vld [vmem:[%s1 + $0x188] sm:$0xff]
    %v101 = vld [vmem:[%s1 + $0x190] sm:$0xff]
    %v102 = vld [vmem:[%s1 + $0x198] sm:$0xff]
    %v103 = vld [vmem:[%s1 + $0x1a0] sm:$0xff]
    %v104 = vld [vmem:[%s1 + $0x1a8] sm:$0xff]
    %v105 = vld [vmem:[%s1 + $0x1b0] sm:$0xff]
    %v106 = vld [vmem:[%s1 + $0x1b8] sm:$0xff]
    %v107 = vld [vmem:[%s1 + $0x1c0] sm:$0xff]
    %v108 = vld [vmem:[%s1 + $0x1c8] sm:$0xff]
    %v109 = vld [vmem:[%s1 + $0x1d0] sm:$0xff]
    %v110 = vld [vmem:[%s1 + $0x1d8] sm:$0xff]
    %v111 = vld [vmem:[%s1 + $0x1e0] sm:$0xff]
    %v112 = vld [vmem:[%s1 + $0x1e8] sm:$0xff]
    %v113 = vld [vmem:[%s1 + $0x1f0] sm:$0xff]
    %v114 = vld [vmem:[%s1 + $0x1f8] sm:$0xff]
    %v115 = vld [vmem:[%s1 + $0x200] sm:$0xff]
    %v116 = vld [vmem:[%s1 + $0x208] sm:$0xff]
    %v117 = vld [vmem:[%s1 + $0x210] sm:$0xff]
    %v118 = vld [vmem:[%s1 + $0x218] sm:$0xff]
    %v119 = vld [vmem:[%s1 + $0x220] sm:$0xff]
    %v120 = vld [vmem:[%s1 + $0x228] sm:$0xff]
    %v121 = vld [vmem:[%s1 + $0x230] sm:$0xff]
    %v122 = vld [vmem:[%s1 + $0x238] sm:$0xff]
    %v123 = vld [vmem:[%s1 + $0x240] sm:$0xff]
    %v124 = vld [vmem:[%s1 + $0x248] sm:$0xff]
    %v125 = vld [vmem:[%s1 + $0x250] sm:$0xff]
    %v126 = vld [vmem:[%s1 + $0x258] sm:$0xff]
    %v127 = vld [vmem:[%s1 + $0x260] sm:$0xff]
    %v128 = vld [vmem:[%s1 + $0x268] sm:$0xff]
    %v129 = vld [vmem:[%s1 + $0x270] sm:$0xff]
    %v130 = vld [vmem:[%s1 + $0x278] sm:$0xff]
    %v131 = vld [vmem:[%s1 + $0x280] sm:$0xff]
    %v132 = vld [vmem:[%s1 + $0x288] sm:$0xff]
    %v133 = vld [vmem:[%s1 + $0x290] sm:$0xff]
    %v134 = vld [vmem:[%s1 + $0x298] sm:$0xff]
    %v135 = vld [vmem:[%s1 + $0x2a0] sm:$0xff]
    %v136 = vld [vmem:[%s1 + $0x2a8] sm:$0xff]
    %v137 = vld [vmem:[%s1 + $0x2b0] sm:$0xff]
    %v138 = vld [vmem:[%s1 + $0x2b8] sm:$0xff]
    %v139 = vld [vmem:[%s1 + $0x2c0] sm:$0xff]
    %v140 = vld [vmem:[%s1 + $0x2c8] sm:$0xff]
    %v141 = vld [vmem:[%s1 + $0x2d0] sm:$0xff]
    %v142 = vld [vmem:[%s1 + $0x2d8] sm:$0xff]
    %v143 = vld [vmem:[%s1 + $0x2e0] sm:$0xff]
    %v144 = vld [vmem:[%s1 + $0x2e8] sm:$0xff]
    %v145 = vld [vmem:[%s1 + $0x2f0] sm:$0xff]
    %v146 = vld [vmem:[%s1 + $0x2f8] sm:$0xff]
    %v147 = vld [vmem:[%s1 + $0x300] sm:$0xff]
    %v148 = vld [vmem:[%s1 + $0x308] sm:$0xff]
    %v149 = vld [vmem:[%s1 + $0x310] sm:$0xff]
    %v150 = vld [vmem:[%s1 + $0x318] sm:$0xff]
    %v151 = vld [vmem:[%s1 + $0x320] sm:$0xff]
    %v152 = vld [vmem:[%s1 + $0x328] sm:$0xff]
    %v153 = vld [vmem:[%s1 + $0x330] sm:$0xff]
    %v154 = vld [vmem:[%s1 + $0x338] sm:$0xff]
    %v155 = vld [vmem:[%s1 + $0x340] sm:$0xff]
    %v156 = vld [vmem:[%s1 + $0x348] sm:$0xff]
    %v157 = vld [vmem:[%s1 + $0x350] sm:$0xff]
    %v158 = vld [vmem:[%s1 + $0x358] sm:$0xff]
    %v159 = vld [vmem:[%s1 + $0x360] sm:$0xff]
    %v160 = vld [vmem:[%s1 + $0x368] sm:$0xff]
    %v161 = vld [vmem:[%s1 + $0x370] sm:$0xff]
    %v162 = vld [vmem:[%s1 + $0x378] sm:$0xff]
    %v163 = vld [vmem:[%s1 + $0x380] sm:$0xff]
    %v164 = vld [vmem:[%s1 + $0x388] sm:$0xff]
    %v165 = vld [vmem:[%s1 + $0x390] sm:$0xff]
    %v166 = vld [vmem:[%s1 + $0x398] sm:$0xff]
    %v167 = vld [vmem:[%s1 + $0x3a0] sm:$0xff]
    %v168 = vld [vmem:[%s1 + $0x3a8] sm:$0xff]
    %v169 = vld [vmem:[%s1 + $0x3b0] sm:$0xff]
    %v170 = vld [vmem:[%s1 + $0x3b8] sm:$0xff]
    %v171 = vld [vmem:[%s1 + $0x3c0] sm:$0xff]
    %v172 = vld [vmem:[%s1 + $0x3c8] sm:$0xff]
    %v173 = vld [vmem:[%s1 + $0x3d0] sm:$0xff]
    %v174 = vld [vmem:[%s1 + $0x3d8] sm:$0xff]
    %v175 = vld [vmem:[%s1 + $0x3e0] sm:$0xff]
    %v176 = vld [vmem:[%s1 + $0x3e8] sm:$0xff]
    %v177 = vld [vmem:[%s1 + $0x3f0] sm:$0xff]
    %v178 = vld [vmem:[%s1 + $0x3f8] sm:$0xff]
    %v179 = vld [vmem:[%s2] sm:$0x1]
    %v181 = vlaneseq
    %v182 = vshrl.u32 %v181, 7
    %v183 = vsub.s32 0, %v182
    %v184 = vrot.slane %v179, %v183
    %v194 = vcombine.low %v43, %v45
    %v195 = vcombine.high %v43, %v45
    %v196 = vcombine.low %v47, %v49
    %v197 = vcombine.high %v47, %v49
    %v199 = vunpack.c.l.s4 1983009808
    %v200 = vunpack.c.0.s8 %v199
    %v201 = vlaneseq
    %v202 = vshrl.u32 %v201, 7
    %v203 = vsub.s32 %v200, %v202
    %v204 = vrot.slane %v194, %v203
    %v206 = vunpack.c.l.s4 1983009808
    %v207 = vunpack.c.0.s8 %v206
    %v208 = vlaneseq
    %v209 = vshrl.u32 %v208, 7
    %v210 = vsub.s32 %v207, %v209
    %v211 = vrot.slane %v195, %v210
    %v213 = vunpack.c.l.s4 1983009808
    %v214 = vunpack.c.0.s8 %v213
    %v215 = vlaneseq
    %v216 = vshrl.u32 %v215, 7
    %v217 = vsub.s32 %v214, %v216
    %v218 = vrot.slane %v196, %v217
    %v220 = vunpack.c.l.s4 1983009808
    %v221 = vunpack.c.0.s8 %v220
    %v222 = vlaneseq
    %v223 = vshrl.u32 %v222, 7
    %v224 = vsub.s32 %v221, %v223
    %v225 = vrot.slane %v197, %v224
    %v226 = vcombine.low %v204, %v218
    %v227 = vcombine.high %v204, %v218
    %v228 = vcombine.low %v211, %v225
    %v229 = vcombine.high %v211, %v225
    %v230 = vcombine.low %v44, %v46
    %v231 = vcombine.high %v44, %v46
    %v232 = vcombine.low %v48, %v50
    %v233 = vcombine.high %v48, %v50
    %v235 = vunpack.c.l.s4 1983009808
    %v236 = vunpack.c.0.s8 %v235
    %v237 = vlaneseq
    %v238 = vshrl.u32 %v237, 7
    %v239 = vsub.s32 %v236, %v238
    %v240 = vrot.slane %v230, %v239
    %v242 = vunpack.c.l.s4 1983009808
    %v243 = vunpack.c.0.s8 %v242
    %v244 = vlaneseq
    %v245 = vshrl.u32 %v244, 7
    %v246 = vsub.s32 %v243, %v245
    %v247 = vrot.slane %v231, %v246
    %v249 = vunpack.c.l.s4 1983009808
    %v250 = vunpack.c.0.s8 %v249
    %v251 = vlaneseq
    %v252 = vshrl.u32 %v251, 7
    %v253 = vsub.s32 %v250, %v252
    %v254 = vrot.slane %v232, %v253
    %v256 = vunpack.c.l.s4 1983009808
    %v257 = vunpack.c.0.s8 %v256
    %v258 = vlaneseq
    %v259 = vshrl.u32 %v258, 7
    %v260 = vsub.s32 %v257, %v259
    %v261 = vrot.slane %v233, %v260
    %v262 = vcombine.low %v240, %v254
    %v263 = vcombine.high %v240, %v254
    %v264 = vcombine.low %v247, %v261
    %v265 = vcombine.high %v247, %v261
    %274 = vmatprep.subr.mxu0 0.0
    %275 = vmatpush1.msra.mxu0 %v51
    %276 = vmatprep.subr.mxu0 0.0
    %277 = vmatpush1.msra.mxu0 %v52
    %278 = vmatprep.subr.mxu0 0.0
    %279 = vmatpush1.msra.mxu0 %v53
    %280 = vmatprep.subr.mxu0 0.0
    %281 = vmatpush1.msra.mxu0 %v54
    %282 = vmatprep.subr.mxu0 0.0
    %283 = vmatpush1.msra.mxu0 %v55
    %284 = vmatprep.subr.mxu0 0.0
    %285 = vmatpush1.msra.mxu0 %v56
    %286 = vmatprep.subr.mxu0 0.0
    %287 = vmatpush1.msra.mxu0 %v57
    %288 = vmatprep.subr.mxu0 0.0
    %289 = vmatpush1.msra.mxu0 %v58
    %290 = vmatprep.subr.mxu0 0.0
    %291 = vmatpush1.msra.mxu0 %v59
    %292 = vmatprep.subr.mxu0 0.0
    %293 = vmatpush1.msra.mxu0 %v60
    %294 = vmatprep.subr.mxu0 0.0
    %295 = vmatpush1.msra.mxu0 %v61
    %296 = vmatprep.subr.mxu0 0.0
    %297 = vmatpush1.msra.mxu0 %v62
    %298 = vmatprep.subr.mxu0 0.0
    %299 = vmatpush1.msra.mxu0 %v63
    %300 = vmatprep.subr.mxu0 0.0
    %301 = vmatpush1.msra.mxu0 %v64
    %302 = vmatprep.subr.mxu0 0.0
    %303 = vmatpush1.msra.mxu0 %v65
    %304 = vmatprep.subr.mxu0 0.0
    %305 = vmatpush1.msra.mxu0 %v66
    %306 = vmatprep.subr.mxu0 0.0
    %307 = vmatpush1.msra.mxu0 %v67
    %308 = vmatprep.subr.mxu0 0.0
    %309 = vmatpush1.msra.mxu0 %v68
    %310 = vmatprep.subr.mxu0 0.0
    %311 = vmatpush1.msra.mxu0 %v69
    %312 = vmatprep.subr.mxu0 0.0
    %313 = vmatpush1.msra.mxu0 %v70
    %314 = vmatprep.subr.mxu0 0.0
    %315 = vmatpush1.msra.mxu0 %v71
    %316 = vmatprep.subr.mxu0 0.0
    %317 = vmatpush1.msra.mxu0 %v72
    %318 = vmatprep.subr.mxu0 0.0
    %319 = vmatpush1.msra.mxu0 %v73
    %320 = vmatprep.subr.mxu0 0.0
    %321 = vmatpush1.msra.mxu0 %v74
    %322 = vmatprep.subr.mxu0 0.0
    %323 = vmatpush1.msra.mxu0 %v75
    %324 = vmatprep.subr.mxu0 0.0
    %325 = vmatpush1.msra.mxu0 %v76
    %326 = vmatprep.subr.mxu0 0.0
    %327 = vmatpush1.msra.mxu0 %v77
    %328 = vmatprep.subr.mxu0 0.0
    %329 = vmatpush1.msra.mxu0 %v78
    %330 = vmatprep.subr.mxu0 0.0
    %331 = vmatpush1.msra.mxu0 %v79
    %332 = vmatprep.subr.mxu0 0.0
    %333 = vmatpush1.msra.mxu0 %v80
    %334 = vmatprep.subr.mxu0 0.0
    %335 = vmatpush1.msra.mxu0 %v81
    %336 = vmatprep.subr.mxu0 0.0
    %337 = vmatpush1.msra.mxu0 %v82
    %338 = vmatprep.mubr.f32.mxu0 %v227
    %339 = vmatmul.mubr.f32.gmra.mrb[0].mxu0 %v226
    %v340 = vpop.f32.mrb[0].mxu0
    %v341 = vadd.f32 %v184, %v340
    %v342 = vpop.f32.mrb[0].mxu0
    %343 = vdwg.mxu0
    %344 = vmatprep.subr.mxu0 0.0
    %345 = vmatpush1.msra.mxu0 %v83
    %346 = vmatprep.subr.mxu0 0.0
    %347 = vmatpush1.msra.mxu0 %v84
    %348 = vmatprep.subr.mxu0 0.0
    %349 = vmatpush1.msra.mxu0 %v85
    %350 = vmatprep.subr.mxu0 0.0
    %351 = vmatpush1.msra.mxu0 %v86
    %352 = vmatprep.subr.mxu0 0.0
    %353 = vmatpush1.msra.mxu0 %v87
    %354 = vmatprep.subr.mxu0 0.0
    %355 = vmatpush1.msra.mxu0 %v88
    %356 = vmatprep.subr.mxu0 0.0
    %357 = vmatpush1.msra.mxu0 %v89
    %358 = vmatprep.subr.mxu0 0.0
    %359 = vmatpush1.msra.mxu0 %v90
    %360 = vmatprep.subr.mxu0 0.0
    %361 = vmatpush1.msra.mxu0 %v91
    %362 = vmatprep.subr.mxu0 0.0
    %363 = vmatpush1.msra.mxu0 %v92
    %364 = vmatprep.subr.mxu0 0.0
    %365 = vmatpush1.msra.mxu0 %v93
    %366 = vmatprep.subr.mxu0 0.0
    %367 = vmatpush1.msra.mxu0 %v94
    %368 = vmatprep.subr.mxu0 0.0
    %369 = vmatpush1.msra.mxu0 %v95
    %370 = vmatprep.subr.mxu0 0.0
    %371 = vmatpush1.msra.mxu0 %v96
    %372 = vmatprep.subr.mxu0 0.0
    %373 = vmatpush1.msra.mxu0 %v97
    %374 = vmatprep.subr.mxu0 0.0
    %375 = vmatpush1.msra.mxu0 %v98
    %376 = vmatprep.subr.mxu0 0.0
    %377 = vmatpush1.msra.mxu0 %v99
    %378 = vmatprep.subr.mxu0 0.0
    %379 = vmatpush1.msra.mxu0 %v100
    %380 = vmatprep.subr.mxu0 0.0
    %381 = vmatpush1.msra.mxu0 %v101
    %382 = vmatprep.subr.mxu0 0.0
    %383 = vmatpush1.msra.mxu0 %v102
    %384 = vmatprep.subr.mxu0 0.0
    %385 = vmatpush1.msra.mxu0 %v103
    %386 = vmatprep.subr.mxu0 0.0
    %387 = vmatpush1.msra.mxu0 %v104
    %388 = vmatprep.subr.mxu0 0.0
    %389 = vmatpush1.msra.mxu0 %v105
    %390 = vmatprep.subr.mxu0 0.0
    %391 = vmatpush1.msra.mxu0 %v106
    %392 = vmatprep.subr.mxu0 0.0
    %393 = vmatpush1.msra.mxu0 %v107
    %394 = vmatprep.subr.mxu0 0.0
    %395 = vmatpush1.msra.mxu0 %v108
    %396 = vmatprep.subr.mxu0 0.0
    %397 = vmatpush1.msra.mxu0 %v109
    %398 = vmatprep.subr.mxu0 0.0
    %399 = vmatpush1.msra.mxu0 %v110
    %400 = vmatprep.subr.mxu0 0.0
    %401 = vmatpush1.msra.mxu0 %v111
    %402 = vmatprep.subr.mxu0 0.0
    %403 = vmatpush1.msra.mxu0 %v112
    %404 = vmatprep.subr.mxu0 0.0
    %405 = vmatpush1.msra.mxu0 %v113
    %406 = vmatprep.subr.mxu0 0.0
    %407 = vmatpush1.msra.mxu0 %v114
    %408 = vmatprep.mubr.f32.mxu0 %v229
    %409 = vmatmul.mubr.f32.gmra.mrb[0].mxu0 %v228
    %v410 = vpop.f32.mrb[0].mxu0
    %v411 = vadd.f32 %v341, %v410
    %v412 = vpop.f32.mrb[0].mxu0
    %413 = vdwg.mxu0
    %414 = vmatprep.subr.mxu0 0.0
    %415 = vmatpush1.msra.mxu0 %v115
    %416 = vmatprep.subr.mxu0 0.0
    %417 = vmatpush1.msra.mxu0 %v116
    %418 = vmatprep.subr.mxu0 0.0
    %419 = vmatpush1.msra.mxu0 %v117
    %420 = vmatprep.subr.mxu0 0.0
    %421 = vmatpush1.msra.mxu0 %v118
    %422 = vmatprep.subr.mxu0 0.0
    %423 = vmatpush1.msra.mxu0 %v119
    %424 = vmatprep.subr.mxu0 0.0
    %425 = vmatpush1.msra.mxu0 %v120
    %426 = vmatprep.subr.mxu0 0.0
    %427 = vmatpush1.msra.mxu0 %v121
    %428 = vmatprep.subr.mxu0 0.0
    %429 = vmatpush1.msra.mxu0 %v122
    %430 = vmatprep.subr.mxu0 0.0
    %431 = vmatpush1.msra.mxu0 %v123
    %432 = vmatprep.subr.mxu0 0.0
    %433 = vmatpush1.msra.mxu0 %v124
    %434 = vmatprep.subr.mxu0 0.0
    %435 = vmatpush1.msra.mxu0 %v125
    %436 = vmatprep.subr.mxu0 0.0
    %437 = vmatpush1.msra.mxu0 %v126
    %438 = vmatprep.subr.mxu0 0.0
    %439 = vmatpush1.msra.mxu0 %v127
    %440 = vmatprep.subr.mxu0 0.0
    %441 = vmatpush1.msra.mxu0 %v128
    %442 = vmatprep.subr.mxu0 0.0
    %443 = vmatpush1.msra.mxu0 %v129
    %444 = vmatprep.subr.mxu0 0.0
    %445 = vmatpush1.msra.mxu0 %v130
    %446 = vmatprep.subr.mxu0 0.0
    %447 = vmatpush1.msra.mxu0 %v131
    %448 = vmatprep.subr.mxu0 0.0
    %449 = vmatpush1.msra.mxu0 %v132
    %450 = vmatprep.subr.mxu0 0.0
    %451 = vmatpush1.msra.mxu0 %v133
    %452 = vmatprep.subr.mxu0 0.0
    %453 = vmatpush1.msra.mxu0 %v134
    %454 = vmatprep.subr.mxu0 0.0
    %455 = vmatpush1.msra.mxu0 %v135
    %456 = vmatprep.subr.mxu0 0.0
    %457 = vmatpush1.msra.mxu0 %v136
    %458 = vmatprep.subr.mxu0 0.0
    %459 = vmatpush1.msra.mxu0 %v137
    %460 = vmatprep.subr.mxu0 0.0
    %461 = vmatpush1.msra.mxu0 %v138
    %462 = vmatprep.subr.mxu0 0.0
    %463 = vmatpush1.msra.mxu0 %v139
    %464 = vmatprep.subr.mxu0 0.0
    %465 = vmatpush1.msra.mxu0 %v140
    %466 = vmatprep.subr.mxu0 0.0
    %467 = vmatpush1.msra.mxu0 %v141
    %468 = vmatprep.subr.mxu0 0.0
    %469 = vmatpush1.msra.mxu0 %v142
    %470 = vmatprep.subr.mxu0 0.0
    %471 = vmatpush1.msra.mxu0 %v143
    %472 = vmatprep.subr.mxu0 0.0
    %473 = vmatpush1.msra.mxu0 %v144
    %474 = vmatprep.subr.mxu0 0.0
    %475 = vmatpush1.msra.mxu0 %v145
    %476 = vmatprep.subr.mxu0 0.0
    %477 = vmatpush1.msra.mxu0 %v146
    %478 = vmatprep.mubr.f32.mxu0 %v263
    %479 = vmatmul.mubr.f32.gmra.mrb[0].mxu0 %v262
    %v480 = vpop.f32.mrb[0].mxu0
    %v481 = vadd.f32 %v411, %v480
    %v482 = vpop.f32.mrb[0].mxu0
    %483 = vdwg.mxu0
    %484 = vmatprep.subr.mxu0 0.0
    %485 = vmatpush1.msra.mxu0 %v147
    %486 = vmatprep.subr.mxu0 0.0
    %487 = vmatpush1.msra.mxu0 %v148
    %488 = vmatprep.subr.mxu0 0.0
    %489 = vmatpush1.msra.mxu0 %v149
    %490 = vmatprep.subr.mxu0 0.0
    %491 = vmatpush1.msra.mxu0 %v150
    %492 = vmatprep.subr.mxu0 0.0
    %493 = vmatpush1.msra.mxu0 %v151
    %494 = vmatprep.subr.mxu0 0.0
    %495 = vmatpush1.msra.mxu0 %v152
    %496 = vmatprep.subr.mxu0 0.0
    %497 = vmatpush1.msra.mxu0 %v153
    %498 = vmatprep.subr.mxu0 0.0
    %499 = vmatpush1.msra.mxu0 %v154
    %500 = vmatprep.subr.mxu0 0.0
    %501 = vmatpush1.msra.mxu0 %v155
    %502 = vmatprep.subr.mxu0 0.0
    %503 = vmatpush1.msra.mxu0 %v156
    %504 = vmatprep.subr.mxu0 0.0
    %505 = vmatpush1.msra.mxu0 %v157
    %506 = vmatprep.subr.mxu0 0.0
    %507 = vmatpush1.msra.mxu0 %v158
    %508 = vmatprep.subr.mxu0 0.0
    %509 = vmatpush1.msra.mxu0 %v159
    %510 = vmatprep.subr.mxu0 0.0
    %511 = vmatpush1.msra.mxu0 %v160
    %512 = vmatprep.subr.mxu0 0.0
    %513 = vmatpush1.msra.mxu0 %v161
    %514 = vmatprep.subr.mxu0 0.0
    %515 = vmatpush1.msra.mxu0 %v162
    %516 = vmatprep.subr.mxu0 0.0
    %517 = vmatpush1.msra.mxu0 %v163
    %518 = vmatprep.subr.mxu0 0.0
    %519 = vmatpush1.msra.mxu0 %v164
    %520 = vmatprep.subr.mxu0 0.0
    %521 = vmatpush1.msra.mxu0 %v165
    %522 = vmatprep.subr.mxu0 0.0
    %523 = vmatpush1.msra.mxu0 %v166
    %524 = vmatprep.subr.mxu0 0.0
    %525 = vmatpush1.msra.mxu0 %v167
    %526 = vmatprep.subr.mxu0 0.0
    %527 = vmatpush1.msra.mxu0 %v168
    %528 = vmatprep.subr.mxu0 0.0
    %529 = vmatpush1.msra.mxu0 %v169
    %530 = vmatprep.subr.mxu0 0.0
    %531 = vmatpush1.msra.mxu0 %v170
    %532 = vmatprep.subr.mxu0 0.0
    %533 = vmatpush1.msra.mxu0 %v171
    %534 = vmatprep.subr.mxu0 0.0
    %535 = vmatpush1.msra.mxu0 %v172
    %536 = vmatprep.subr.mxu0 0.0
    %537 = vmatpush1.msra.mxu0 %v173
    %538 = vmatprep.subr.mxu0 0.0
    %539 = vmatpush1.msra.mxu0 %v174
    %540 = vmatprep.subr.mxu0 0.0
    %541 = vmatpush1.msra.mxu0 %v175
    %542 = vmatprep.subr.mxu0 0.0
    %543 = vmatpush1.msra.mxu0 %v176
    %544 = vmatprep.subr.mxu0 0.0
    %545 = vmatpush1.msra.mxu0 %v177
    %546 = vmatprep.subr.mxu0 0.0
    %547 = vmatpush1.msra.mxu0 %v178
    %548 = vmatprep.mubr.f32.mxu0 %v265
    %549 = vmatmul.mubr.f32.gmra.mrb[0].mxu0 %v264
    %v550 = vpop.f32.mrb[0].mxu0
    %v551 = vadd.f32 %v481, %v550
    %v552 = vpop.f32.mrb[0].mxu0
    %553 = vdwg.mxu0
    %vm554 = vcmp.gt.f32.partialorder %v551, 0.0
    %s555 = sld [smem:[#allocation2]]
    %v556 = vstv %s555
    %v557 = vmul.f32 %v556, %v551
    %v558 = vsel %vm554, %v551, %v557
    %v559 = vld [vmem:[%s3] sm:$0xff]
    %v560 = vld [vmem:[%s3 + $0x8] sm:$0xff]
    %v561 = vld [vmem:[%s3 + $0x10] sm:$0xff]
    %v562 = vld [vmem:[%s3 + $0x18] sm:$0xff]
    %v563 = vld [vmem:[%s4] sm:$0x1]
    %v565 = vlaneseq
    %v566 = vshrl.u32 %v565, 7
    %v567 = vsub.s32 0, %v566
    %v568 = vrot.slane %v563, %v567
    %vm570 = vcmask 261120
    %v572 = vsel %vm570, %v558, 0
    %574 = vmatprep.subr.mxu0 0.0
    %575 = vmatpush1.msra.mxu0 %v559
    %576 = vmatprep.subr.mxu0 0.0
    %577 = vmatpush1.msra.mxu0 %v560
    %578 = vmatprep.subr.mxu0 0.0
    %579 = vmatpush1.msra.mxu0 %v561
    %580 = vmatprep.subr.mxu0 0.0
    %581 = vmatpush1.msra.mxu0 %v562
    %582 = vmatprep.subr.mxu0 0.0
    %583 = vmatpush1.msra.mxu0 0.0
    %584 = vmatprep.subr.mxu0 0.0
    %585 = vmatpush1.msra.mxu0 0.0
    %586 = vmatprep.subr.mxu0 0.0
    %587 = vmatpush1.msra.mxu0 0.0
    %588 = vmatprep.subr.mxu0 0.0
    %589 = vmatpush1.msra.mxu0 0.0
    %590 = vmatprep.subr.mxu0 0.0
    %591 = vmatpush1.msra.mxu0 0.0
    %592 = vmatprep.subr.mxu0 0.0
    %593 = vmatpush1.msra.mxu0 0.0
    %594 = vmatprep.subr.mxu0 0.0
    %595 = vmatpush1.msra.mxu0 0.0
    %596 = vmatprep.subr.mxu0 0.0
    %597 = vmatpush1.msra.mxu0 0.0
    %598 = vmatprep.subr.mxu0 0.0
    %599 = vmatpush1.msra.mxu0 0.0
    %600 = vmatprep.subr.mxu0 0.0
    %601 = vmatpush1.msra.mxu0 0.0
    %602 = vmatprep.subr.mxu0 0.0
    %603 = vmatpush1.msra.mxu0 0.0
    %604 = vmatprep.subr.mxu0 0.0
    %605 = vmatpush1.msra.mxu0 0.0
    %606 = vmatprep.subr.mxu0 0.0
    %607 = vmatpush1.msra.mxu0 0.0
    %608 = vmatprep.subr.mxu0 0.0
    %609 = vmatpush1.msra.mxu0 0.0
    %610 = vmatprep.subr.mxu0 0.0
    %611 = vmatpush1.msra.mxu0 0.0
    %612 = vmatprep.subr.mxu0 0.0
    %613 = vmatpush1.msra.mxu0 0.0
    %614 = vmatprep.subr.mxu0 0.0
    %615 = vmatpush1.msra.mxu0 0.0
    %616 = vmatprep.subr.mxu0 0.0
    %617 = vmatpush1.msra.mxu0 0.0
    %618 = vmatprep.subr.mxu0 0.0
    %619 = vmatpush1.msra.mxu0 0.0
    %620 = vmatprep.subr.mxu0 0.0
    %621 = vmatpush1.msra.mxu0 0.0
    %622 = vmatprep.subr.mxu0 0.0
    %623 = vmatpush1.msra.mxu0 0.0
    %624 = vmatprep.subr.mxu0 0.0
    %625 = vmatpush1.msra.mxu0 0.0
    %626 = vmatprep.subr.mxu0 0.0
    %627 = vmatpush1.msra.mxu0 0.0
    %628 = vmatprep.subr.mxu0 0.0
    %629 = vmatpush1.msra.mxu0 0.0
    %630 = vmatprep.subr.mxu0 0.0
    %631 = vmatpush1.msra.mxu0 0.0
    %632 = vmatprep.subr.mxu0 0.0
    %633 = vmatpush1.msra.mxu0 0.0
    %634 = vmatprep.subr.mxu0 0.0
    %635 = vmatpush1.msra.mxu0 0.0
    %636 = vmatprep.subr.mxu0 0.0
    %637 = vmatpush1.msra.mxu0 0.0
    %638 = vmatprep.mubr.f32.mxu0 0.0
    %639 = vmatmul.mubr.f32.gmra.mrb[0].mxu0 %v572
    %v640 = vpop.f32.mrb[0].mxu0
    %v641 = vadd.f32 %v568, %v640
    %v642 = vpop.f32.mrb[0].mxu0
    %643 = vdwg.mxu0
    %vm644 = vcmp.gt.f32.partialorder %v641, 0.0
    %s645 = sld [smem:[#allocation2 + $0x1]]
    %v646 = vstv %s645
    %v647 = vmul.f32 %v646, %v641
    %v648 = vsel %vm644, %v641, %v647
    %v649 = vld [vmem:[%s5] sm:$0xff]
    %v650 = vld [vmem:[%s5 + $0x8] sm:$0xff]
    %v651 = vld [vmem:[%s5 + $0x10] sm:$0xff]
    %v652 = vld [vmem:[%s5 + $0x18] sm:$0xff]
    %v653 = vld [vmem:[%s6] sm:$0x1]
    %v655 = vlaneseq
    %v656 = vshrl.u32 %v655, 7
    %v657 = vsub.s32 0, %v656
    %v658 = vrot.slane %v653, %v657
    %v661 = vsel %vm570, %v648, 0
    %663 = vmatprep.subr.mxu0 0.0
    %664 = vmatpush1.msra.mxu0 %v649
    %665 = vmatprep.subr.mxu0 0.0
    %666 = vmatpush1.msra.mxu0 %v650
    %667 = vmatprep.subr.mxu0 0.0
    %668 = vmatpush1.msra.mxu0 %v651
    %669 = vmatprep.subr.mxu0 0.0
    %670 = vmatpush1.msra.mxu0 %v652
    %671 = vmatprep.subr.mxu0 0.0
    %672 = vmatpush1.msra.mxu0 0.0
    %673 = vmatprep.subr.mxu0 0.0
    %674 = vmatpush1.msra.mxu0 0.0
    %675 = vmatprep.subr.mxu0 0.0
    %676 = vmatpush1.msra.mxu0 0.0
    %677 = vmatprep.subr.mxu0 0.0
    %678 = vmatpush1.msra.mxu0 0.0
    %679 = vmatprep.subr.mxu0 0.0
    %680 = vmatpush1.msra.mxu0 0.0
    %681 = vmatprep.subr.mxu0 0.0
    %682 = vmatpush1.msra.mxu0 0.0
    %683 = vmatprep.subr.mxu0 0.0
    %684 = vmatpush1.msra.mxu0 0.0
    %685 = vmatprep.subr.mxu0 0.0
    %686 = vmatpush1.msra.mxu0 0.0
    %687 = vmatprep.subr.mxu0 0.0
    %688 = vmatpush1.msra.mxu0 0.0
    %689 = vmatprep.subr.mxu0 0.0
    %690 = vmatpush1.msra.mxu0 0.0
    %691 = vmatprep.subr.mxu0 0.0
    %692 = vmatpush1.msra.mxu0 0.0
    %693 = vmatprep.subr.mxu0 0.0
    %694 = vmatpush1.msra.mxu0 0.0
    %695 = vmatprep.subr.mxu0 0.0
    %696 = vmatpush1.msra.mxu0 0.0
    %697 = vmatprep.subr.mxu0 0.0
    %698 = vmatpush1.msra.mxu0 0.0
    %699 = vmatprep.subr.mxu0 0.0
    %700 = vmatpush1.msra.mxu0 0.0
    %701 = vmatprep.subr.mxu0 0.0
    %702 = vmatpush1.msra.mxu0 0.0
    %703 = vmatprep.subr.mxu0 0.0
    %704 = vmatpush1.msra.mxu0 0.0
    %705 = vmatprep.subr.mxu0 0.0
    %706 = vmatpush1.msra.mxu0 0.0
    %707 = vmatprep.subr.mxu0 0.0
    %708 = vmatpush1.msra.mxu0 0.0
    %709 = vmatprep.subr.mxu0 0.0
    %710 = vmatpush1.msra.mxu0 0.0
    %711 = vmatprep.subr.mxu0 0.0
    %712 = vmatpush1.msra.mxu0 0.0
    %713 = vmatprep.subr.mxu0 0.0
    %714 = vmatpush1.msra.mxu0 0.0
    %715 = vmatprep.subr.mxu0 0.0
    %716 = vmatpush1.msra.mxu0 0.0
    %717 = vmatprep.subr.mxu0 0.0
    %718 = vmatpush1.msra.mxu0 0.0
    %719 = vmatprep.subr.mxu0 0.0
    %720 = vmatpush1.msra.mxu0 0.0
    %721 = vmatprep.subr.mxu0 0.0
    %722 = vmatpush1.msra.mxu0 0.0
    %723 = vmatprep.subr.mxu0 0.0
    %724 = vmatpush1.msra.mxu0 0.0
    %725 = vmatprep.subr.mxu0 0.0
    %726 = vmatpush1.msra.mxu0 0.0
    %727 = vmatprep.mubr.f32.mxu0 0.0
    %728 = vmatmul.mubr.f32.gmra.mrb[0].mxu0 %v661
    %v729 = vpop.f32.mrb[0].mxu0
    %v730 = vadd.f32 %v658, %v729
    %v731 = vpop.f32.mrb[0].mxu0
    %732 = vdwg.mxu0
    %vm733 = vcmask 15360
    %734 = vst.msk [vmem:[#allocation5] sm:$0xff] %vm733, %v730
    // Predicated region
    $region38: #{tpu_custom_call.1} parent=1 // pred_check
      _
    $region39: #{tpu_custom_call.1} parent=1 // pred_check_branch
      %736 = sbr.rel (0) target = $region41
    $region40: #{tpu_custom_call.1} parent=1 // pred_region
      %s738 = ssub.s32 128, 32
      %739 = vsyncadd [#allocation3], %s738
      %s740 = sshll.u32 [#allocation5], 4
      %s741 = int_to_ptr.vmem [resolvable:$true] %s740
      %746 = dma.vmem_to_hbm [thread:$0]  %s741, 32, %s8, [#allocation3], 32, 32, 2
    $region41: #{tpu_custom_call.1} parent=1 // pred_fallthru
      _
    // Predicated region
    $region42: #{tpu_custom_call.1} parent=1 // pred_check
      _
    $region43: #{tpu_custom_call.1} parent=1 // pred_check_branch
      %748 = sbr.rel (0) target = $region45
    $region44: #{tpu_custom_call.1} parent=1 // pred_region
      %749 = dma.done [#allocation3], 128
    $region45: #{tpu_custom_call.1} parent=1 // pred_fallthru
      _
    %750 = vsyncpa [#allocation3], 1
    %751 = vsyncpa [#allocation4], 1

// kernel: tpu_custom_call.1
$region0: #{tpu_custom_call.1}
  #allocation0 [shape = 'u32[]', space=smem, size = 0x4, offset = 0x4, fixed_abs, tag = 'smem constant byte address 0x4 - core index']
  #allocation1 [shape = 'u32[144,128]{1,0:T(1,128)}', space=vmem, size = 0x12000, scoped, tag = 'internal scratch']
  %s0 = inlined_call_operand.vmem [shape: f32[2,1024], index: 0, kind: input, shape index: {}]
  %s1 = inlined_call_operand.vmem [shape: f32[1024,32], index: 1, kind: input, shape index: {}]
  %s2 = inlined_call_operand.vmem [shape: f32[1,32], index: 2, kind: input, shape index: {}]
  %s3 = inlined_call_operand.vmem [shape: f32[32,32], index: 3, kind: input, shape index: {}]
  %s4 = inlined_call_operand.vmem [shape: f32[1,32], index: 4, kind: input, shape index: {}]
  %s5 = inlined_call_operand.vmem [shape: f32[32,2], index: 5, kind: input, shape index: {}]
  %s6 = inlined_call_operand.vmem [shape: f32[1,2], index: 6, kind: input, shape index: {}]
  %s7 = inlined_call_operand.vmem [shape: f32[2], index: 7, kind: input, shape index: {}]
  %s8 = inlined_call_operand.hbm [shape: f32[2,2], index: 8, kind: output, shape index: {}]
  %s9 = sld [smem:[#allocation0]]
  $region46: #{tpu_custom_call.1} parent=0
    _
  %s11 = ssub.s32 1, %s9
  %s12 = scalar_select 0, %s11, %s9
  $region1: #{tpu_custom_call.1} parent=0
    #allocation2 [shape = 'u8[512]{0}', space=smem, size = 0x200, scoped, tag = 'input window, operand 7, single buffered']
    #allocation3 [shape = 's32[1]{0}', space=sflag, size = 0x4, scoped, tag = 'scoped memory for tpu_custom_call.1']
    #allocation4 [shape = 's32[1]{0}', space=sflag, size = 0x4, scoped, tag = 'scoped memory for tpu_custom_call.1']
    #allocation5 [shape = 'u8[4096]{0}', space=vmem, size = 0x1000, scoped, tag = 'output window, operand 0, single buffered']
    %13 = vsyncpa [#allocation4], 0
    %14 = vsyncpa [#allocation3], 0
    // Predicated region
    $region2: #{tpu_custom_call.1} parent=1 // pred_check
      _
    $region3: #{tpu_custom_call.1} parent=1 // pred_check_branch
      %16 = sbr.rel (0) target = $region5
    $region4: #{tpu_custom_call.1} parent=1 // pred_region
      _
    $region5: #{tpu_custom_call.1} parent=1 // pred_fallthru
      _
    // Predicated region
    $region6: #{tpu_custom_call.1} parent=1 // pred_check
      _
    $region7: #{tpu_custom_call.1} parent=1 // pred_check_branch
      %18 = sbr.rel (0) target = $region9
    $region8: #{tpu_custom_call.1} parent=1 // pred_region
      _
    $region9: #{tpu_custom_call.1} parent=1 // pred_fallthru
      _
    // Predicated region
    $region10: #{tpu_custom_call.1} parent=1 // pred_check
      _
    $region11: #{tpu_custom_call.1} parent=1 // pred_check_branch
      %20 = sbr.rel (0) target = $region13
    $region12: #{tpu_custom_call.1} parent=1 // pred_region
      _
    $region13: #{tpu_custom_call.1} parent=1 // pred_fallthru
      _
    // Predicated region
    $region14: #{tpu_custom_call.1} parent=1 // pred_check
      _
    $region15: #{tpu_custom_call.1} parent=1 // pred_check_branch
      %22 = sbr.rel (0) target = $region17
    $region16: #{tpu_custom_call.1} parent=1 // pred_region
      _
    $region17: #{tpu_custom_call.1} parent=1 // pred_fallthru
      _
    // Predicated region
    $region18: #{tpu_custom_call.1} parent=1 // pred_check
      _
    $region19: #{tpu_custom_call.1} parent=1 // pred_check_branch
      %24 = sbr.rel (0) target = $region21
    $region20: #{tpu_custom_call.1} parent=1 // pred_region
      _
    $region21: #{tpu_custom_call.1} parent=1 // pred_fallthru
      _
    // Predicated region
    $region22: #{tpu_custom_call.1} parent=1 // pred_check
      _
    $region23: #{tpu_custom_call.1} parent=1 // pred_check_branch
      %26 = sbr.rel (0) target = $region25
    $region24: #{tpu_custom_call.1} parent=1 // pred_region
      _
    $region25: #{tpu_custom_call.1} parent=1 // pred_fallthru
      _
    // Predicated region
    $region26: #{tpu_custom_call.1} parent=1 // pred_check
      _
    $region27: #{tpu_custom_call.1} parent=1 // pred_check_branch
      %28 = sbr.rel (0) target = $region29
    $region28: #{tpu_custom_call.1} parent=1 // pred_region
      _
    $region29: #{tpu_custom_call.1} parent=1 // pred_fallthru
      _
    // Predicated region
    $region30: #{tpu_custom_call.1} parent=1 // pred_check
      _
    $region31: #{tpu_custom_call.1} parent=1 // pred_check_branch
      %30 = sbr.rel (0) target = $region33
    $region32: #{tpu_custom_call.1} parent=1 // pred_region
      %s32 = ssub.s32 16, 16
      %33 = vsyncadd [#allocation4], %s32
      %s35 = sshll.u32 %s7, 4
      %s36 = int_to_ptr.vmem [resolvable:$true] %s35
      %38 = dma.vmem_to_smem %s36, 16, [#allocation2], [#allocation4]
    $region33: #{tpu_custom_call.1} parent=1 // pred_fallthru
      _
    // Predicated region
    $region34: #{tpu_custom_call.1} parent=1 // pred_check
      _
    $region35: #{tpu_custom_call.1} parent=1 // pred_check_branch
      %40 = sbr.rel (0) target = $region37
    $region36: #{tpu_custom_call.1} parent=1 // pred_region
      %41 = dma.done [#allocation4], 16
    $region37: #{tpu_custom_call.1} parent=1 // pred_fallthru
      _
    %42 = sfence
    %v43 = vld [vmem:[%s0] sm:$0xff]
    %v44 = vld [vmem:[%s0 + $0x8] sm:$0xff]
    %v45 = vld [vmem:[%s0 + $0x10] sm:$0xff]
    %v46 = vld [vmem:[%s0 + $0x18] sm:$0xff]
    %v47 = vld [vmem:[%s0 + $0x20] sm:$0xff]
    %v48 = vld [vmem:[%s0 + $0x28] sm:$0xff]
    %v49 = vld [vmem:[%s0 + $0x30] sm:$0xff]
    %v50 = vld [vmem:[%s0 + $0x38] sm:$0xff]
    %v51 = vld [vmem:[%s1] sm:$0xff]
    %v52 = vld [vmem:[%s1 + $0x8] sm:$0xff]
    %v53 = vld [vmem:[%s1 + $0x10] sm:$0xff]
    %v54 = vld [vmem:[%s1 + $0x18] sm:$0xff]
    %v55 = vld [vmem:[%s1 + $0x20] sm:$0xff]
    %v56 = vld [vmem:[%s1 + $0x28] sm:$0xff]
    %v57 = vld [vmem:[%s1 + $0x30] sm:$0xff]
    %v58 = vld [vmem:[%s1 + $0x38] sm:$0xff]
    %v59 = vld [vmem:[%s1 + $0x40] sm:$0xff]
    %v60 = vld [vmem:[%s1 + $0x48] sm:$0xff]
    %v61 = vld [vmem:[%s1 + $0x50] sm:$0xff]
    %v62 = vld [vmem:[%s1 + $0x58] sm:$0xff]
    %v63 = vld [vmem:[%s1 + $0x60] sm:$0xff]
    %v64 = vld [vmem:[%s1 + $0x68] sm:$0xff]
    %v65 = vld [vmem:[%s1 + $0x70] sm:$0xff]
    %v66 = vld [vmem:[%s1 + $0x78] sm:$0xff]
    %v67 = vld [vmem:[%s1 + $0x80] sm:$0xff]
    %v68 = vld [vmem:[%s1 + $0x88] sm:$0xff]
    %v69 = vld [vmem:[%s1 + $0x90] sm:$0xff]
    %v70 = vld [vmem:[%s1 + $0x98] sm:$0xff]
    %v71 = vld [vmem:[%s1 + $0xa0] sm:$0xff]
    %v72 = vld [vmem:[%s1 + $0xa8] sm:$0xff]
    %v73 = vld [vmem:[%s1 + $0xb0] sm:$0xff]
    %v74 = vld [vmem:[%s1 + $0xb8] sm:$0xff]
    %v75 = vld [vmem:[%s1 + $0xc0] sm:$0xff]
    %v76 = vld [vmem:[%s1 + $0xc8] sm:$0xff]
    %v77 = vld [vmem:[%s1 + $0xd0] sm:$0xff]
    %v78 = vld [vmem:[%s1 + $0xd8] sm:$0xff]
    %v79 = vld [vmem:[%s1 + $0xe0] sm:$0xff]
    %v80 = vld [vmem:[%s1 + $0xe8] sm:$0xff]
    %v81 = vld [vmem:[%s1 + $0xf0] sm:$0xff]
    %v82 = vld [vmem:[%s1 + $0xf8] sm:$0xff]
    %v83 = vld [vmem:[%s1 + $0x100] sm:$0xff]
    %v84 = vld [vmem:[%s1 + $0x108] sm:$0xff]
    %v85 = vld [vmem:[%s1 + $0x110] sm:$0xff]
    %v86 = vld [vmem:[%s1 + $0x118] sm:$0xff]
    %v87 = vld [vmem:[%s1 + $0x120] sm:$0xff]
    %v88 = vld [vmem:[%s1 + $0x128] sm:$0xff]
    %v89 = vld [vmem:[%s1 + $0x130] sm:$0xff]
    %v90 = vld [vmem:[%s1 + $0x138] sm:$0xff]
    %v91 = vld [vmem:[%s1 + $0x140] sm:$0xff]
    %v92 = vld [vmem:[%s1 + $0x148] sm:$0xff]
    %v93 = vld [vmem:[%s1 + $0x150] sm:$0xff]
    %v94 = vld [vmem:[%s1 + $0x158] sm:$0xff]
    %v95 = vld [vmem:[%s1 + $0x160] sm:$0xff]
    %v96 = vld [vmem:[%s1 + $0x168] sm:$0xff]
    %v97 = vld [vmem:[%s1 + $0x170] sm:$0xff]
    %v98 = vld [vmem:[%s1 + $0x178] sm:$0xff]
    %v99 = vld [vmem:[%s1 + $0x180] sm:$0xff]
    %v100 = vld [vmem:[%s1 + $0x188] sm:$0xff]
    %v101 = vld [vmem:[%s1 + $0x190] sm:$0xff]
    %v102 = vld [vmem:[%s1 + $0x198] sm:$0xff]
    %v103 = vld [vmem:[%s1 + $0x1a0] sm:$0xff]
    %v104 = vld [vmem:[%s1 + $0x1a8] sm:$0xff]
    %v105 = vld [vmem:[%s1 + $0x1b0] sm:$0xff]
    %v106 = vld [vmem:[%s1 + $0x1b8] sm:$0xff]
    %v107 = vld [vmem:[%s1 + $0x1c0] sm:$0xff]
    %v108 = vld [vmem:[%s1 + $0x1c8] sm:$0xff]
    %v109 = vld [vmem:[%s1 + $0x1d0] sm:$0xff]
    %v110 = vld [vmem:[%s1 + $0x1d8] sm:$0xff]
    %v111 = vld [vmem:[%s1 + $0x1e0] sm:$0xff]
    %v112 = vld [vmem:[%s1 + $0x1e8] sm:$0xff]
    %v113 = vld [vmem:[%s1 + $0x1f0] sm:$0xff]
    %v114 = vld [vmem:[%s1 + $0x1f8] sm:$0xff]
    %v115 = vld [vmem:[%s1 + $0x200] sm:$0xff]
    %v116 = vld [vmem:[%s1 + $0x208] sm:$0xff]
    %v117 = vld [vmem:[%s1 + $0x210] sm:$0xff]
    %v118 = vld [vmem:[%s1 + $0x218] sm:$0xff]
    %v119 = vld [vmem:[%s1 + $0x220] sm:$0xff]
    %v120 = vld [vmem:[%s1 + $0x228] sm:$0xff]
    %v121 = vld [vmem:[%s1 + $0x230] sm:$0xff]
    %v122 = vld [vmem:[%s1 + $0x238] sm:$0xff]
    %v123 = vld [vmem:[%s1 + $0x240] sm:$0xff]
    %v124 = vld [vmem:[%s1 + $0x248] sm:$0xff]
    %v125 = vld [vmem:[%s1 + $0x250] sm:$0xff]
    %v126 = vld [vmem:[%s1 + $0x258] sm:$0xff]
    %v127 = vld [vmem:[%s1 + $0x260] sm:$0xff]
    %v128 = vld [vmem:[%s1 + $0x268] sm:$0xff]
    %v129 = vld [vmem:[%s1 + $0x270] sm:$0xff]
    %v130 = vld [vmem:[%s1 + $0x278] sm:$0xff]
    %v131 = vld [vmem:[%s1 + $0x280] sm:$0xff]
    %v132 = vld [vmem:[%s1 + $0x288] sm:$0xff]
    %v133 = vld [vmem:[%s1 + $0x290] sm:$0xff]
    %v134 = vld [vmem:[%s1 + $0x298] sm:$0xff]
    %v135 = vld [vmem:[%s1 + $0x2a0] sm:$0xff]
    %v136 = vld [vmem:[%s1 + $0x2a8] sm:$0xff]
    %v137 = vld [vmem:[%s1 + $0x2b0] sm:$0xff]
    %v138 = vld [vmem:[%s1 + $0x2b8] sm:$0xff]
    %v139 = vld [vmem:[%s1 + $0x2c0] sm:$0xff]
    %v140 = vld [vmem:[%s1 + $0x2c8] sm:$0xff]
    %v141 = vld [vmem:[%s1 + $0x2d0] sm:$0xff]
    %v142 = vld [vmem:[%s1 + $0x2d8] sm:$0xff]
    %v143 = vld [vmem:[%s1 + $0x2e0] sm:$0xff]
    %v144 = vld [vmem:[%s1 + $0x2e8] sm:$0xff]
    %v145 = vld [vmem:[%s1 + $0x2f0] sm:$0xff]
    %v146 = vld [vmem:[%s1 + $0x2f8] sm:$0xff]
    %v147 = vld [vmem:[%s1 + $0x300] sm:$0xff]
    %v148 = vld [vmem:[%s1 + $0x308] sm:$0xff]
    %v149 = vld [vmem:[%s1 + $0x310] sm:$0xff]
    %v150 = vld [vmem:[%s1 + $0x318] sm:$0xff]
    %v151 = vld [vmem:[%s1 + $0x320] sm:$0xff]
    %v152 = vld [vmem:[%s1 + $0x328] sm:$0xff]
    %v153 = vld [vmem:[%s1 + $0x330] sm:$0xff]
    %v154 = vld [vmem:[%s1 + $0x338] sm:$0xff]
    %v155 = vld [vmem:[%s1 + $0x340] sm:$0xff]
    %v156 = vld [vmem:[%s1 + $0x348] sm:$0xff]
    %v157 = vld [vmem:[%s1 + $0x350] sm:$0xff]
    %v158 = vld [vmem:[%s1 + $0x358] sm:$0xff]
    %v159 = vld [vmem:[%s1 + $0x360] sm:$0xff]
    %v160 = vld [vmem:[%s1 + $0x368] sm:$0xff]
    %v161 = vld [vmem:[%s1 + $0x370] sm:$0xff]
    %v162 = vld [vmem:[%s1 + $0x378] sm:$0xff]
    %v163 = vld [vmem:[%s1 + $0x380] sm:$0xff]
    %v164 = vld [vmem:[%s1 + $0x388] sm:$0xff]
    %v165 = vld [vmem:[%s1 + $0x390] sm:$0xff]
    %v166 = vld [vmem:[%s1 + $0x398] sm:$0xff]
    %v167 = vld [vmem:[%s1 + $0x3a0] sm:$0xff]
    %v168 = vld [vmem:[%s1 + $0x3a8] sm:$0xff]
    %v169 = vld [vmem:[%s1 + $0x3b0] sm:$0xff]
    %v170 = vld [vmem:[%s1 + $0x3b8] sm:$0xff]
    %v171 = vld [vmem:[%s1 + $0x3c0] sm:$0xff]
    %v172 = vld [vmem:[%s1 + $0x3c8] sm:$0xff]
    %v173 = vld [vmem:[%s1 + $0x3d0] sm:$0xff]
    %v174 = vld [vmem:[%s1 + $0x3d8] sm:$0xff]
    %v175 = vld [vmem:[%s1 + $0x3e0] sm:$0xff]
    %v176 = vld [vmem:[%s1 + $0x3e8] sm:$0xff]
    %v177 = vld [vmem:[%s1 + $0x3f0] sm:$0xff]
    %v178 = vld [vmem:[%s1 + $0x3f8] sm:$0xff]
    %v179 = vld [vmem:[%s2] sm:$0x1]
    %v181 = vlaneseq
    %v182 = vshrl.u32 %v181, 7
    %v183 = vsub.s32 0, %v182
    %v184 = vrot.slane %v179, %v183
    %v194 = vcombine.low %v43, %v45
    %v195 = vcombine.high %v43, %v45
    %v196 = vcombine.low %v47, %v49
    %v197 = vcombine.high %v47, %v49
    %v199 = vunpack.c.l.s4 1983009808
    %v200 = vunpack.c.0.s8 %v199
    %v201 = vlaneseq
    %v202 = vshrl.u32 %v201, 7
    %v203 = vsub.s32 %v200, %v202
    %v204 = vrot.slane %v194, %v203
    %v206 = vunpack.c.l.s4 1983009808
    %v207 = vunpack.c.0.s8 %v206
    %v208 = vlaneseq
    %v209 = vshrl.u32 %v208, 7
    %v210 = vsub.s32 %v207, %v209
    %v211 = vrot.slane %v195, %v210
    %v213 = vunpack.c.l.s4 1983009808
    %v214 = vunpack.c.0.s8 %v213
    %v215 = vlaneseq
    %v216 = vshrl.u32 %v215, 7
    %v217 = vsub.s32 %v214, %v216
    %v218 = vrot.slane %v196, %v217
    %v220 = vunpack.c.l.s4 1983009808
    %v221 = vunpack.c.0.s8 %v220
    %v222 = vlaneseq
    %v223 = vshrl.u32 %v222, 7
    %v224 = vsub.s32 %v221, %v223
    %v225 = vrot.slane %v197, %v224
    %v226 = vcombine.low %v204, %v218
    %v227 = vcombine.high %v204, %v218
    %v228 = vcombine.low %v211, %v225
    %v229 = vcombine.high %v211, %v225
    %v230 = vcombine.low %v44, %v46
    %v231 = vcombine.high %v44, %v46
    %v232 = vcombine.low %v48, %v50
    %v233 = vcombine.high %v48, %v50
    %v235 = vunpack.c.l.s4 1983009808
    %v236 = vunpack.c.0.s8 %v235
    %v237 = vlaneseq
    %v238 = vshrl.u32 %v237, 7
    %v239 = vsub.s32 %v236, %v238
    %v240 = vrot.slane %v230, %v239
    %v242 = vunpack.c.l.s4 1983009808
    %v243 = vunpack.c.0.s8 %v242
    %v244 = vlaneseq
    %v245 = vshrl.u32 %v244, 7
    %v246 = vsub.s32 %v243, %v245
    %v247 = vrot.slane %v231, %v246
    %v249 = vunpack.c.l.s4 1983009808
    %v250 = vunpack.c.0.s8 %v249
    %v251 = vlaneseq
    %v252 = vshrl.u32 %v251, 7
    %v253 = vsub.s32 %v250, %v252
    %v254 = vrot.slane %v232, %v253
    %v256 = vunpack.c.l.s4 1983009808
    %v257 = vunpack.c.0.s8 %v256
    %v258 = vlaneseq
    %v259 = vshrl.u32 %v258, 7
    %v260 = vsub.s32 %v257, %v259
    %v261 = vrot.slane %v233, %v260
    %v262 = vcombine.low %v240, %v254
    %v263 = vcombine.high %v240, %v254
    %v264 = vcombine.low %v247, %v261
    %v265 = vcombine.high %v247, %v261
    %274 = vmatprep.subr.mxu0 0.0
    %275 = vmatpush1.msra.mxu0 %v51
    %276 = vmatprep.subr.mxu0 0.0
    %277 = vmatpush1.msra.mxu0 %v52
    %278 = vmatprep.subr.mxu0 0.0
    %279 = vmatpush1.msra.mxu0 %v53
    %280 = vmatprep.subr.mxu0 0.0
    %281 = vmatpush1.msra.mxu0 %v54
    %282 = vmatprep.subr.mxu0 0.0
    %283 = vmatpush1.msra.mxu0 %v55
    %284 = vmatprep.subr.mxu0 0.0
    %285 = vmatpush1.msra.mxu0 %v56
    %286 = vmatprep.subr.mxu0 0.0
    %287 = vmatpush1.msra.mxu0 %v57
    %288 = vmatprep.subr.mxu0 0.0
    %289 = vmatpush1.msra.mxu0 %v58
    %290 = vmatprep.subr.mxu0 0.0
    %291 = vmatpush1.msra.mxu0 %v59
    %292 = vmatprep.subr.mxu0 0.0
    %293 = vmatpush1.msra.mxu0 %v60
    %294 = vmatprep.subr.mxu0 0.0
    %295 = vmatpush1.msra.mxu0 %v61
    %296 = vmatprep.subr.mxu0 0.0
    %297 = vmatpush1.msra.mxu0 %v62
    %298 = vmatprep.subr.mxu0 0.0
    %299 = vmatpush1.msra.mxu0 %v63
    %300 = vmatprep.subr.mxu0 0.0
    %301 = vmatpush1.msra.mxu0 %v64
    %302 = vmatprep.subr.mxu0 0.0
    %303 = vmatpush1.msra.mxu0 %v65
    %304 = vmatprep.subr.mxu0 0.0
    %305 = vmatpush1.msra.mxu0 %v66
    %306 = vmatprep.subr.mxu0 0.0
    %307 = vmatpush1.msra.mxu0 %v67
    %308 = vmatprep.subr.mxu0 0.0
    %309 = vmatpush1.msra.mxu0 %v68
    %310 = vmatprep.subr.mxu0 0.0
    %311 = vmatpush1.msra.mxu0 %v69
    %312 = vmatprep.subr.mxu0 0.0
    %313 = vmatpush1.msra.mxu0 %v70
    %314 = vmatprep.subr.mxu0 0.0
    %315 = vmatpush1.msra.mxu0 %v71
    %316 = vmatprep.subr.mxu0 0.0
    %317 = vmatpush1.msra.mxu0 %v72
    %318 = vmatprep.subr.mxu0 0.0
    %319 = vmatpush1.msra.mxu0 %v73
    %320 = vmatprep.subr.mxu0 0.0
    %321 = vmatpush1.msra.mxu0 %v74
    %322 = vmatprep.subr.mxu0 0.0
    %323 = vmatpush1.msra.mxu0 %v75
    %324 = vmatprep.subr.mxu0 0.0
    %325 = vmatpush1.msra.mxu0 %v76
    %326 = vmatprep.subr.mxu0 0.0
    %327 = vmatpush1.msra.mxu0 %v77
    %328 = vmatprep.subr.mxu0 0.0
    %329 = vmatpush1.msra.mxu0 %v78
    %330 = vmatprep.subr.mxu0 0.0
    %331 = vmatpush1.msra.mxu0 %v79
    %332 = vmatprep.subr.mxu0 0.0
    %333 = vmatpush1.msra.mxu0 %v80
    %334 = vmatprep.subr.mxu0 0.0
    %335 = vmatpush1.msra.mxu0 %v81
    %336 = vmatprep.subr.mxu0 0.0
    %337 = vmatpush1.msra.mxu0 %v82
    %338 = vmatprep.mubr.f32.mxu0 %v227
    %339 = vmatmul.mubr.f32.gmra.mrb[0].mxu0 %v226
    %v340 = vpop.f32.mrb[0].mxu0
    %v341 = vadd.f32 %v184, %v340
    %v342 = vpop.f32.mrb[0].mxu0
    %343 = vdwg.mxu0
    %344 = vmatprep.subr.mxu0 0.0
    %345 = vmatpush1.msra.mxu0 %v83
    %346 = vmatprep.subr.mxu0 0.0
    %347 = vmatpush1.msra.mxu0 %v84
    %348 = vmatprep.subr.mxu0 0.0
    %349 = vmatpush1.msra.mxu0 %v85
    %350 = vmatprep.subr.mxu0 0.0
    %351 = vmatpush1.msra.mxu0 %v86
    %352 = vmatprep.subr.mxu0 0.0
    %353 = vmatpush1.msra.mxu0 %v87
    %354 = vmatprep.subr.mxu0 0.0
    %355 = vmatpush1.msra.mxu0 %v88
    %356 = vmatprep.subr.mxu0 0.0
    %357 = vmatpush1.msra.mxu0 %v89
    %358 = vmatprep.subr.mxu0 0.0
    %359 = vmatpush1.msra.mxu0 %v90
    %360 = vmatprep.subr.mxu0 0.0
    %361 = vmatpush1.msra.mxu0 %v91
    %362 = vmatprep.subr.mxu0 0.0
    %363 = vmatpush1.msra.mxu0 %v92
    %364 = vmatprep.subr.mxu0 0.0
    %365 = vmatpush1.msra.mxu0 %v93
    %366 = vmatprep.subr.mxu0 0.0
    %367 = vmatpush1.msra.mxu0 %v94
    %368 = vmatprep.subr.mxu0 0.0
    %369 = vmatpush1.msra.mxu0 %v95
    %370 = vmatprep.subr.mxu0 0.0
    %371 = vmatpush1.msra.mxu0 %v96
    %372 = vmatprep.subr.mxu0 0.0
    %373 = vmatpush1.msra.mxu0 %v97
    %374 = vmatprep.subr.mxu0 0.0
    %375 = vmatpush1.msra.mxu0 %v98
    %376 = vmatprep.subr.mxu0 0.0
    %377 = vmatpush1.msra.mxu0 %v99
    %378 = vmatprep.subr.mxu0 0.0
    %379 = vmatpush1.msra.mxu0 %v100
    %380 = vmatprep.subr.mxu0 0.0
    %381 = vmatpush1.msra.mxu0 %v101
    %382 = vmatprep.subr.mxu0 0.0
    %383 = vmatpush1.msra.mxu0 %v102
    %384 = vmatprep.subr.mxu0 0.0
    %385 = vmatpush1.msra.mxu0 %v103
    %386 = vmatprep.subr.mxu0 0.0
    %387 = vmatpush1.msra.mxu0 %v104
    %388 = vmatprep.subr.mxu0 0.0
    %389 = vmatpush1.msra.mxu0 %v105
    %390 = vmatprep.subr.mxu0 0.0
    %391 = vmatpush1.msra.mxu0 %v106
    %392 = vmatprep.subr.mxu0 0.0
    %393 = vmatpush1.msra.mxu0 %v107
    %394 = vmatprep.subr.mxu0 0.0
    %395 = vmatpush1.msra.mxu0 %v108
    %396 = vmatprep.subr.mxu0 0.0
    %397 = vmatpush1.msra.mxu0 %v109
    %398 = vmatprep.subr.mxu0 0.0
    %399 = vmatpush1.msra.mxu0 %v110
    %400 = vmatprep.subr.mxu0 0.0
    %401 = vmatpush1.msra.mxu0 %v111
    %402 = vmatprep.subr.mxu0 0.0
    %403 = vmatpush1.msra.mxu0 %v112
    %404 = vmatprep.subr.mxu0 0.0
    %405 = vmatpush1.msra.mxu0 %v113
    %406 = vmatprep.subr.mxu0 0.0
    %407 = vmatpush1.msra.mxu0 %v114
    %408 = vmatprep.mubr.f32.mxu0 %v229
    %409 = vmatmul.mubr.f32.gmra.mrb[0].mxu0 %v228
    %v410 = vpop.f32.mrb[0].mxu0
    %v411 = vadd.f32 %v341, %v410
    %v412 = vpop.f32.mrb[0].mxu0
    %413 = vdwg.mxu0
    %414 = vmatprep.subr.mxu0 0.0
    %415 = vmatpush1.msra.mxu0 %v115
    %416 = vmatprep.subr.mxu0 0.0
    %417 = vmatpush1.msra.mxu0 %v116
    %418 = vmatprep.subr.mxu0 0.0
    %419 = vmatpush1.msra.mxu0 %v117
    %420 = vmatprep.subr.mxu0 0.0
    %421 = vmatpush1.msra.mxu0 %v118
    %422 = vmatprep.subr.mxu0 0.0
    %423 = vmatpush1.msra.mxu0 %v119
    %424 = vmatprep.subr.mxu0 0.0
    %425 = vmatpush1.msra.mxu0 %v120
    %426 = vmatprep.subr.mxu0 0.0
    %427 = vmatpush1.msra.mxu0 %v121
    %428 = vmatprep.subr.mxu0 0.0
    %429 = vmatpush1.msra.mxu0 %v122
    %430 = vmatprep.subr.mxu0 0.0
    %431 = vmatpush1.msra.mxu0 %v123
    %432 = vmatprep.subr.mxu0 0.0
    %433 = vmatpush1.msra.mxu0 %v124
    %434 = vmatprep.subr.mxu0 0.0
    %435 = vmatpush1.msra.mxu0 %v125
    %436 = vmatprep.subr.mxu0 0.0
    %437 = vmatpush1.msra.mxu0 %v126
    %438 = vmatprep.subr.mxu0 0.0
    %439 = vmatpush1.msra.mxu0 %v127
    %440 = vmatprep.subr.mxu0 0.0
    %441 = vmatpush1.msra.mxu0 %v128
    %442 = vmatprep.subr.mxu0 0.0
    %443 = vmatpush1.msra.mxu0 %v129
    %444 = vmatprep.subr.mxu0 0.0
    %445 = vmatpush1.msra.mxu0 %v130
    %446 = vmatprep.subr.mxu0 0.0
    %447 = vmatpush1.msra.mxu0 %v131
    %448 = vmatprep.subr.mxu0 0.0
    %449 = vmatpush1.msra.mxu0 %v132
    %450 = vmatprep.subr.mxu0 0.0
    %451 = vmatpush1.msra.mxu0 %v133
    %452 = vmatprep.subr.mxu0 0.0
    %453 = vmatpush1.msra.mxu0 %v134
    %454 = vmatprep.subr.mxu0 0.0
    %455 = vmatpush1.msra.mxu0 %v135
    %456 = vmatprep.subr.mxu0 0.0
    %457 = vmatpush1.msra.mxu0 %v136
    %458 = vmatprep.subr.mxu0 0.0
    %459 = vmatpush1.msra.mxu0 %v137
    %460 = vmatprep.subr.mxu0 0.0
    %461 = vmatpush1.msra.mxu0 %v138
    %462 = vmatprep.subr.mxu0 0.0
    %463 = vmatpush1.msra.mxu0 %v139
    %464 = vmatprep.subr.mxu0 0.0
    %465 = vmatpush1.msra.mxu0 %v140
    %466 = vmatprep.subr.mxu0 0.0
    %467 = vmatpush1.msra.mxu0 %v141
    %468 = vmatprep.subr.mxu0 0.0
    %469 = vmatpush1.msra.mxu0 %v142
    %470 = vmatprep.subr.mxu0 0.0
    %471 = vmatpush1.msra.mxu0 %v143
    %472 = vmatprep.subr.mxu0 0.0
    %473 = vmatpush1.msra.mxu0 %v144
    %474 = vmatprep.subr.mxu0 0.0
    %475 = vmatpush1.msra.mxu0 %v145
    %476 = vmatprep.subr.mxu0 0.0
    %477 = vmatpush1.msra.mxu0 %v146
    %478 = vmatprep.mubr.f32.mxu0 %v263
    %479 = vmatmul.mubr.f32.gmra.mrb[0].mxu0 %v262
    %v480 = vpop.f32.mrb[0].mxu0
    %v481 = vadd.f32 %v411, %v480
    %v482 = vpop.f32.mrb[0].mxu0
    %483 = vdwg.mxu0
    %484 = vmatprep.subr.mxu0 0.0
    %485 = vmatpush1.msra.mxu0 %v147
    %486 = vmatprep.subr.mxu0 0.0
    %487 = vmatpush1.msra.mxu0 %v148
    %488 = vmatprep.subr.mxu0 0.0
    %489 = vmatpush1.msra.mxu0 %v149
    %490 = vmatprep.subr.mxu0 0.0
    %491 = vmatpush1.msra.mxu0 %v150
    %492 = vmatprep.subr.mxu0 0.0
    %493 = vmatpush1.msra.mxu0 %v151
    %494 = vmatprep.subr.mxu0 0.0
    %495 = vmatpush1.msra.mxu0 %v152
    %496 = vmatprep.subr.mxu0 0.0
    %497 = vmatpush1.msra.mxu0 %v153
    %498 = vmatprep.subr.mxu0 0.0
    %499 = vmatpush1.msra.mxu0 %v154
    %500 = vmatprep.subr.mxu0 0.0
    %501 = vmatpush1.msra.mxu0 %v155
    %502 = vmatprep.subr.mxu0 0.0
    %503 = vmatpush1.msra.mxu0 %v156
    %504 = vmatprep.subr.mxu0 0.0
    %505 = vmatpush1.msra.mxu0 %v157
    %506 = vmatprep.subr.mxu0 0.0
    %507 = vmatpush1.msra.mxu0 %v158
    %508 = vmatprep.subr.mxu0 0.0
    %509 = vmatpush1.msra.mxu0 %v159
    %510 = vmatprep.subr.mxu0 0.0
    %511 = vmatpush1.msra.mxu0 %v160
    %512 = vmatprep.subr.mxu0 0.0
    %513 = vmatpush1.msra.mxu0 %v161
    %514 = vmatprep.subr.mxu0 0.0
    %515 = vmatpush1.msra.mxu0 %v162
    %516 = vmatprep.subr.mxu0 0.0
    %517 = vmatpush1.msra.mxu0 %v163
    %518 = vmatprep.subr.mxu0 0.0
    %519 = vmatpush1.msra.mxu0 %v164
    %520 = vmatprep.subr.mxu0 0.0
    %521 = vmatpush1.msra.mxu0 %v165
    %522 = vmatprep.subr.mxu0 0.0
    %523 = vmatpush1.msra.mxu0 %v166
    %524 = vmatprep.subr.mxu0 0.0
    %525 = vmatpush1.msra.mxu0 %v167
    %526 = vmatprep.subr.mxu0 0.0
    %527 = vmatpush1.msra.mxu0 %v168
    %528 = vmatprep.subr.mxu0 0.0
    %529 = vmatpush1.msra.mxu0 %v169
    %530 = vmatprep.subr.mxu0 0.0
    %531 = vmatpush1.msra.mxu0 %v170
    %532 = vmatprep.subr.mxu0 0.0
    %533 = vmatpush1.msra.mxu0 %v171
    %534 = vmatprep.subr.mxu0 0.0
    %535 = vmatpush1.msra.mxu0 %v172
    %536 = vmatprep.subr.mxu0 0.0
    %537 = vmatpush1.msra.mxu0 %v173
    %538 = vmatprep.subr.mxu0 0.0
    %539 = vmatpush1.msra.mxu0 %v174
    %540 = vmatprep.subr.mxu0 0.0
    %541 = vmatpush1.msra.mxu0 %v175
    %542 = vmatprep.subr.mxu0 0.0
    %543 = vmatpush1.msra.mxu0 %v176
    %544 = vmatprep.subr.mxu0 0.0
    %545 = vmatpush1.msra.mxu0 %v177
    %546 = vmatprep.subr.mxu0 0.0
    %547 = vmatpush1.msra.mxu0 %v178
    %548 = vmatprep.mubr.f32.mxu0 %v265
    %549 = vmatmul.mubr.f32.gmra.mrb[0].mxu0 %v264
    %v550 = vpop.f32.mrb[0].mxu0
    %v551 = vadd.f32 %v481, %v550
    %v552 = vpop.f32.mrb[0].mxu0
    %553 = vdwg.mxu0
    %vm554 = vcmp.gt.f32.partialorder %v551, 0.0
    %s555 = sld [smem:[#allocation2]]
    %v556 = vstv %s555
    %v557 = vmul.f32 %v556, %v551
    %v558 = vsel %vm554, %v551, %v557
    %v559 = vld [vmem:[%s3] sm:$0xff]
    %v560 = vld [vmem:[%s3 + $0x8] sm:$0xff]
    %v561 = vld [vmem:[%s3 + $0x10] sm:$0xff]
    %v562 = vld [vmem:[%s3 + $0x18] sm:$0xff]
    %v563 = vld [vmem:[%s4] sm:$0x1]
    %v565 = vlaneseq
    %v566 = vshrl.u32 %v565, 7
    %v567 = vsub.s32 0, %v566
    %v568 = vrot.slane %v563, %v567
    %vm570 = vcmask 261120
    %v572 = vsel %vm570, %v558, 0
    %574 = vmatprep.subr.mxu0 0.0
    %575 = vmatpush1.msra.mxu0 %v559
    %576 = vmatprep.subr.mxu0 0.0
    %577 = vmatpush1.msra.mxu0 %v560
    %578 = vmatprep.subr.mxu0 0.0
    %579 = vmatpush1.msra.mxu0 %v561
    %580 = vmatprep.subr.mxu0 0.0
    %581 = vmatpush1.msra.mxu0 %v562
    %582 = vmatprep.subr.mxu0 0.0
    %583 = vmatpush1.msra.mxu0 0.0
    %584 = vmatprep.subr.mxu0 0.0
    %585 = vmatpush1.msra.mxu0 0.0
    %586 = vmatprep.subr.mxu0 0.0
    %587 = vmatpush1.msra.mxu0 0.0
    %588 = vmatprep.subr.mxu0 0.0
    %589 = vmatpush1.msra.mxu0 0.0
    %590 = vmatprep.subr.mxu0 0.0
    %591 = vmatpush1.msra.mxu0 0.0
    %592 = vmatprep.subr.mxu0 0.0
    %593 = vmatpush1.msra.mxu0 0.0
    %594 = vmatprep.subr.mxu0 0.0
    %595 = vmatpush1.msra.mxu0 0.0
    %596 = vmatprep.subr.mxu0 0.0
    %597 = vmatpush1.msra.mxu0 0.0
    %598 = vmatprep.subr.mxu0 0.0
    %599 = vmatpush1.msra.mxu0 0.0
    %600 = vmatprep.subr.mxu0 0.0
    %601 = vmatpush1.msra.mxu0 0.0
    %602 = vmatprep.subr.mxu0 0.0
    %603 = vmatpush1.msra.mxu0 0.0
    %604 = vmatprep.subr.mxu0 0.0
    %605 = vmatpush1.msra.mxu0 0.0
    %606 = vmatprep.subr.mxu0 0.0
    %607 = vmatpush1.msra.mxu0 0.0
    %608 = vmatprep.subr.mxu0 0.0
    %609 = vmatpush1.msra.mxu0 0.0
    %610 = vmatprep.subr.mxu0 0.0
    %611 = vmatpush1.msra.mxu0 0.0
    %612 = vmatprep.subr.mxu0 0.0
    %613 = vmatpush1.msra.mxu0 0.0
    %614 = vmatprep.subr.mxu0 0.0
    %615 = vmatpush1.msra.mxu0 0.0
    %616 = vmatprep.subr.mxu0 0.0
    %617 = vmatpush1.msra.mxu0 0.0
    %618 = vmatprep.subr.mxu0 0.0
    %619 = vmatpush1.msra.mxu0 0.0
    %620 = vmatprep.subr.mxu0 0.0
    %621 = vmatpush1.msra.mxu0 0.0
    %622 = vmatprep.subr.mxu0 0.0
    %623 = vmatpush1.msra.mxu0 0.0
    %624 = vmatprep.subr.mxu0 0.0
    %625 = vmatpush1.msra.mxu0 0.0
    %626 = vmatprep.subr.mxu0 0.0
    %627 = vmatpush1.msra.mxu0 0.0
    %628 = vmatprep.subr.mxu0 0.0
    %629 = vmatpush1.msra.mxu0 0.0
    %630 = vmatprep.subr.mxu0 0.0
    %631 = vmatpush1.msra.mxu0 0.0
    %632 = vmatprep.subr.mxu0 0.0
    %633 = vmatpush1.msra.mxu0 0.0
    %634 = vmatprep.subr.mxu0 0.0
    %635 = vmatpush1.msra.mxu0 0.0
    %636 = vmatprep.subr.mxu0 0.0
    %637 = vmatpush1.msra.mxu0 0.0
    %638 = vmatprep.mubr.f32.mxu0 0.0
    %639 = vmatmul.mubr.f32.gmra.mrb[0].mxu0 %v572
    %v640 = vpop.f32.mrb[0].mxu0
    %v641 = vadd.f32 %v568, %v640
    %v642 = vpop.f32.mrb[0].mxu0
    %643 = vdwg.mxu0
    %vm644 = vcmp.gt.f32.partialorder %v641, 0.0
    %s645 = sld [smem:[#allocation2 + $0x1]]
    %v646 = vstv %s645
    %v647 = vmul.f32 %v646, %v641
    %v648 = vsel %vm644, %v641, %v647
    %v649 = vld [vmem:[%s5] sm:$0xff]
    %v650 = vld [vmem:[%s5 + $0x8] sm:$0xff]
    %v651 = vld [vmem:[%s5 + $0x10] sm:$0xff]
    %v652 = vld [vmem:[%s5 + $0x18] sm:$0xff]
    %v653 = vld [vmem:[%s6] sm:$0x1]
    %v655 = vlaneseq
    %v656 = vshrl.u32 %v655, 7
    %v657 = vsub.s32 0, %v656
    %v658 = vrot.slane %v653, %v657
    %v661 = vsel %vm570, %v648, 0
    %663 = vmatprep.subr.mxu0 0.0
    %664 = vmatpush1.msra.mxu0 %v649
    %665 = vmatprep.subr.mxu0 0.0
    %666 = vmatpush1.msra.mxu0 %v650
    %667 = vmatprep.subr.mxu0 0.0
    %668 = vmatpush1.msra.mxu0 %v651
    %669 = vmatprep.subr.mxu0 0.0
    %670 = vmatpush1.msra.mxu0 %v652
    %671 = vmatprep.subr.mxu0 0.0
    %672 = vmatpush1.msra.mxu0 0.0
    %673 = vmatprep.subr.mxu0 0.0
    %674 = vmatpush1.msra.mxu0 0.0
    %675 = vmatprep.subr.mxu0 0.0
    %676 = vmatpush1.msra.mxu0 0.0
    %677 = vmatprep.subr.mxu0 0.0
    %678 = vmatpush1.msra.mxu0 0.0
    %679 = vmatprep.subr.mxu0 0.0
    %680 = vmatpush1.msra.mxu0 0.0
    %681 = vmatprep.subr.mxu0 0.0
    %682 = vmatpush1.msra.mxu0 0.0
    %683 = vmatprep.subr.mxu0 0.0
    %684 = vmatpush1.msra.mxu0 0.0
    %685 = vmatprep.subr.mxu0 0.0
    %686 = vmatpush1.msra.mxu0 0.0
    %687 = vmatprep.subr.mxu0 0.0
    %688 = vmatpush1.msra.mxu0 0.0
    %689 = vmatprep.subr.mxu0 0.0
    %690 = vmatpush1.msra.mxu0 0.0
    %691 = vmatprep.subr.mxu0 0.0
    %692 = vmatpush1.msra.mxu0 0.0
    %693 = vmatprep.subr.mxu0 0.0
    %694 = vmatpush1.msra.mxu0 0.0
    %695 = vmatprep.subr.mxu0 0.0
    %696 = vmatpush1.msra.mxu0 0.0
    %697 = vmatprep.subr.mxu0 0.0
    %698 = vmatpush1.msra.mxu0 0.0
    %699 = vmatprep.subr.mxu0 0.0
    %700 = vmatpush1.msra.mxu0 0.0
    %701 = vmatprep.subr.mxu0 0.0
    %702 = vmatpush1.msra.mxu0 0.0
    %703 = vmatprep.subr.mxu0 0.0
    %704 = vmatpush1.msra.mxu0 0.0
    %705 = vmatprep.subr.mxu0 0.0
    %706 = vmatpush1.msra.mxu0 0.0
    %707 = vmatprep.subr.mxu0 0.0
    %708 = vmatpush1.msra.mxu0 0.0
    %709 = vmatprep.subr.mxu0 0.0
    %710 = vmatpush1.msra.mxu0 0.0
    %711 = vmatprep.subr.mxu0 0.0
    %712 = vmatpush1.msra.mxu0 0.0
    %713 = vmatprep.subr.mxu0 0.0
    %714 = vmatpush1.msra.mxu0 0.0
    %715 = vmatprep.subr.mxu0 0.0
    %716 = vmatpush1.msra.mxu0 0.0
    %717 = vmatprep.subr.mxu0 0.0
    %718 = vmatpush1.msra.mxu0 0.0
    %719 = vmatprep.subr.mxu0 0.0
    %720 = vmatpush1.msra.mxu0 0.0
    %721 = vmatprep.subr.mxu0 0.0
    %722 = vmatpush1.msra.mxu0 0.0
    %723 = vmatprep.subr.mxu0 0.0
    %724 = vmatpush1.msra.mxu0 0.0
    %725 = vmatprep.subr.mxu0 0.0
    %726 = vmatpush1.msra.mxu0 0.0
    %727 = vmatprep.mubr.f32.mxu0 0.0
    %728 = vmatmul.mubr.f32.gmra.mrb[0].mxu0 %v661
    %v729 = vpop.f32.mrb[0].mxu0
    %v730 = vadd.f32 %v658, %v729
    %v731 = vpop.f32.mrb[0].mxu0
    %732 = vdwg.mxu0
    %vm733 = vcmask 15360
    %734 = vst.msk [vmem:[#allocation5] sm:$0xff] %vm733, %v730
    // Predicated region
    $region38: #{tpu_custom_call.1} parent=1 // pred_check
      _
    $region39: #{tpu_custom_call.1} parent=1 // pred_check_branch
      %736 = sbr.rel (0) target = $region41
    $region40: #{tpu_custom_call.1} parent=1 // pred_region
      %s738 = ssub.s32 128, 32
      %739 = vsyncadd [#allocation3], %s738
      %s740 = sshll.u32 [#allocation5], 4
      %s741 = int_to_ptr.vmem [resolvable:$true] %s740
      %746 = dma.vmem_to_hbm [thread:$0]  %s741, 32, %s8, [#allocation3], 32, 32, 2
    $region41: #{tpu_custom_call.1} parent=1 // pred_fallthru
      _
    // Predicated region
    $region42: #{tpu_custom_call.1} parent=1 // pred_check
      _
    $region43: #{tpu_custom_call.1} parent=1 // pred_check_branch
      %748 = sbr.rel (0) target = $region45
    $region44: #{tpu_custom_call.1} parent=1 // pred_region
      %749 = dma.done [#allocation3], 128
    $region45: #{tpu_custom_call.1} parent=1 // pred_fallthru
      _
    %750 = vsyncpa [#allocation3], 1
    %751 = vsyncpa [#allocation4], 1

</llo_original>
